<compile_context>
chip_gen: v5e
topology: v5e:2x2
jax: 0.10.0
libtpu: 0.0.40
codegen_flags: <defaults>
</compile_context>

<pallas_src>
import jax
import jax.numpy as jnp
from jax.experimental import pallas as pl
from jax.experimental.pallas import tpu as pltpu


# ------------------------------ fused kernel --------------------------------

def bottleneck_kernel(x_ref, w1_ref, s1_ref, b1_ref,
                      w2_ref, s2_ref, b2_ref,
                      w3_ref, s3_ref, b3_ref,
                      o_ref, pad_ref):
    """One batch image per grid step; all intermediates stay in VMEM.

    x_ref  : (1, H, W, Cin)        NHWC block (f32 or bf16 I/O)
    w1_ref : (Cin, width)          compute dtype
    w2_ref : (3, 3*width, width)   compute dtype, kx-major/cin-minor rows
    w3_ref : (width, Cout)         compute dtype
    s*/b*  : (1, C) f32            folded BatchNorm scale / bias
    o_ref  : (1, H, W, Cout)       NHWC block
    pad_ref: (H+2, W, 3*width)     VMEM scratch: H-halo'd im2col band
    """
    _, H, W, Cin = x_ref.shape
    width = w1_ref.shape[1]
    Cout = w3_ref.shape[1]
    cd = pad_ref.dtype                        # matmul compute dtype

    # ---- conv1 (1x1) + bn1 + relu ------------------------------------------
    y1 = jnp.dot(x_ref[...].reshape(H * W, Cin).astype(cd), w1_ref[...],
                 preferred_element_type=jnp.float32)
    y1 = jnp.maximum(y1 * s1_ref[...] + b1_ref[...], 0.0)    # (H*W, width) f32

    # ---- conv2 (3x3, stride=1, pad=1, groups=1) + bn2 + relu ---------------
    # Build the kx im2col band without sublane-unaligned slices:
    #   left (kx=0) tap  = roll(+1) with column 0 zeroed
    #   right (kx=2) tap = roll(-1) with column W-1 zeroed
    # (rolling the flattened H*W axis is equivalent because the wrapped rows
    #  land exactly in the columns that the mask zeroes.)
    left_f = pltpu.roll(y1, 1, axis=0)                 # out[i] = in[i-1]
    right_f = pltpu.roll(y1, H * W - 1, axis=0)        # out[i] = in[i+1]
    w_idx = jax.lax.broadcasted_iota(jnp.int32, (H, W, width), 1)
    left = jnp.where(w_idx == 0, 0.0, left_f.reshape(H, W, width))
    right = jnp.where(w_idx == W - 1, 0.0, right_f.reshape(H, W, width))
    band = jnp.concatenate([left, y1.reshape(H, W, width), right],
                           axis=-1)                    # (H, W, 3*width)

    # H halo: only the two border rows are zeroed (re-zeroed each step so the
    # scratch is valid on every megacore; the interior is fully rewritten).
    pad_ref[0] = jnp.zeros((W, 3 * width), cd)
    pad_ref[H + 1] = jnp.zeros((W, 3 * width), cd)
    pad_ref[1:H + 1] = band.astype(cd)

    # Three large-K matmuls (K = 3*width); ky shift is a cheap leading-dim
    # slice of the scratch.
    acc = jnp.zeros((H * W, width), jnp.float32)
    for ky in range(3):
        patch = pad_ref[ky:ky + H].reshape(H * W, 3 * width)
        acc = acc + jnp.dot(patch, w2_ref[ky],
                            preferred_element_type=jnp.float32)
    y2 = jnp.maximum(acc * s2_ref[...] + b2_ref[...], 0.0)

    # ---- conv3 (1x1) + bn3 + residual add + relu ---------------------------
    y3 = jnp.dot(y2.astype(cd), w3_ref[...],
                 preferred_element_type=jnp.float32)
    y3 = y3 * s3_ref[...] + b3_ref[...]
    # Re-read x here (short live range) for the identity residual.
    y3 = y3 + x_ref[...].reshape(H * W, Cout).astype(jnp.float32)
    o_ref[...] = jnp.maximum(y3, 0.0).reshape(1, H, W, Cout).astype(o_ref.dtype)


# ----------------------------- parameter prep -------------------------------

def prepare_params(params, compute_dtype=jnp.bfloat16):
    """Cast weights to the compute dtype and fold BN params ONCE (hoisted out
    of the per-call wrapper). w2 is pre-reshaped to (3, 3*width, width) with
    kx-major / cin-minor rows to match the in-kernel im2col channel order."""
    cd = compute_dtype
    f32 = jnp.float32
    width = params["w1"].shape[1]
    cout = params["w3"].shape[1]
    return dict(
        w1=params["w1"].astype(cd),
        w2=params["w2"].reshape(3, 3 * width, width).astype(cd),
        w3=params["w3"].astype(cd),
        s1=params["s1"].reshape(1, width).astype(f32),
        b1=params["b1"].reshape(1, width).astype(f32),
        s2=params["s2"].reshape(1, width).astype(f32),
        b2=params["b2"].reshape(1, width).astype(f32),
        s3=params["s3"].reshape(1, cout).astype(f32),
        b3=params["b3"].reshape(1, cout).astype(f32),
    )


def _vmem_limit_bytes():
    """~96 MiB on 128 MiB parts (v5e/v6e), ~48 MiB on v7x's 64 MiB VMEM."""
    try:
        cap = int(pltpu.get_tpu_info().vmem_capacity_bytes)
    except Exception:
        cap = 128 * 1024 * 1024
    return min((cap * 3) // 4, 96 * 1024 * 1024)


# --------------------------------- wrappers ----------------------------------

def bottleneck_forward_nhwc(x_nhwc, prepared):
    """Fused Bottleneck forward on NHWC input (stride=1, downsample=None).

    I/O dtype follows x_nhwc.dtype: pass bf16 activations for halved HBM
    traffic (recommended on v5e/v6e); BN/accumulation stay f32 inside.
    """
    N, H, W, Cin = x_nhwc.shape
    width = prepared["w1"].shape[1]
    Cout = prepared["w3"].shape[1]
    assert Cin == Cout, "downsample=None requires inplanes == planes * 4"
    cd = prepared["w1"].dtype

    act_bytes = jnp.dtype(x_nhwc.dtype).itemsize
    flops = 2 * N * H * W * (Cin * width + 9 * width * width + width * Cout)
    bytes_accessed = (
        N * H * W * Cin * act_bytes + N * H * W * Cout * act_bytes +
        sum(int(v.size) * jnp.dtype(v.dtype).itemsize for v in prepared.values()))

    return pl.pallas_call(
        bottleneck_kernel,
        out_shape=jax.ShapeDtypeStruct((N, H, W, Cout), x_nhwc.dtype),
        grid=(N,),
        in_specs=[
            pl.BlockSpec((1, H, W, Cin), lambda n: (n, 0, 0, 0)),
            pl.BlockSpec((Cin, width), lambda n: (0, 0)),
            pl.BlockSpec((1, width), lambda n: (0, 0)),
            pl.BlockSpec((1, width), lambda n: (0, 0)),
            pl.BlockSpec((3, 3 * width, width), lambda n: (0, 0, 0)),
            pl.BlockSpec((1, width), lambda n: (0, 0)),
            pl.BlockSpec((1, width), lambda n: (0, 0)),
            pl.BlockSpec((width, Cout), lambda n: (0, 0)),
            pl.BlockSpec((1, Cout), lambda n: (0, 0)),
            pl.BlockSpec((1, Cout), lambda n: (0, 0)),
        ],
        out_specs=pl.BlockSpec((1, H, W, Cout), lambda n: (n, 0, 0, 0)),
        scratch_shapes=[pltpu.VMEM((H + 2, W, 3 * width), cd)],
        compiler_params=pltpu.CompilerParams(
            dimension_semantics=("parallel",),        # batch shards over TCs
            vmem_limit_bytes=_vmem_limit_bytes()),
        cost_estimate=pl.CostEstimate(
            flops=flops, transcendentals=0, bytes_accessed=bytes_accessed),
    )(x_nhwc, prepared["w1"], prepared["s1"], prepared["b1"],
      prepared["w2"], prepared["s2"], prepared["b2"],
      prepared["w3"], prepared["s3"], prepared["b3"])


def bottleneck_forward(x_nchw, prepared):
    """PyTorch-layout (NCHW) entry point (f32 I/O parity).  In an NHWC
    pipeline call bottleneck_forward_nhwc directly (ideally with bf16
    activations) and the two boundary transposes disappear."""
    x = jnp.transpose(x_nchw, (0, 2, 3, 1))
    out = bottleneck_forward_nhwc(x, prepared)
    return jnp.transpose(out, (0, 3, 1, 2))


# ------------------------- parameter construction ---------------------------

def make_params(key, inplanes, planes, base_width=64, groups=1, eps=1e-5):
    width = int(planes * (base_width / 64.0)) * groups
    cout = planes * 4
    ks = jax.random.split(key, 15)

    def bn_fold(kg, kb, km, kv, c):
        gamma = 1.0 + 0.1 * jax.random.normal(kg, (c,), jnp.float32)
        beta = 0.1 * jax.random.normal(kb, (c,), jnp.float32)
        mean = 0.1 * jax.random.normal(km, (c,), jnp.float32)
        var = jnp.abs(jax.random.normal(kv, (c,), jnp.float32)) + 0.5
        scale = gamma / jnp.sqrt(var + eps)
        bias = beta - mean * scale
        return scale, bias

    w1 = 0.2 * jax.random.normal(ks[0], (inplanes, width), jnp.float32)
    w2 = 0.2 * jax.random.normal(ks[1], (3, 3, width, width), jnp.float32)
    w3 = 0.2 * jax.random.normal(ks[2], (width, cout), jnp.float32)
    s1, b1 = bn_fold(ks[3], ks[4], ks[5], ks[6], width)
    s2, b2 = bn_fold(ks[7], ks[8], ks[9], ks[10], width)
    s3, b3 = bn_fold(ks[11], ks[12], ks[13], ks[14], cout)
    return dict(w1=w1, w2=w2, w3=w3, s1=s1, b1=b1, s2=s2, b2=b2, s3=s3, b3=b3)


# ---------------------------- pure-JAX reference -----------------------------

def bottleneck_ref(x, p, compute_dtype=jnp.float32):
    """Reference Bottleneck.  compute_dtype lets the check match the kernel's
    mixed-precision policy (bf16 operands, f32 accumulation) exactly."""
    dn = ("NCHW", "OIHW", "NCHW")
    cd = compute_dtype

    def conv(x_, w_oihw, pad):
        return jax.lax.conv_general_dilated(
            x_.astype(cd), w_oihw.astype(cd), (1, 1), pad,
            dimension_numbers=dn, preferred_element_type=jnp.float32)

    def bn(y, s, b):
        return y * s[None, :, None, None] + b[None, :, None, None]

    o = conv(x, jnp.transpose(p["w1"])[:, :, None, None], "VALID")
    o = jax.nn.relu(bn(o, p["s1"], p["b1"]))
    o = conv(o, jnp.transpose(p["w2"], (3, 2, 0, 1)), [(1, 1), (1, 1)])
    o = jax.nn.relu(bn(o, p["s2"], p["b2"]))
    o = conv(o, jnp.transpose(p["w3"])[:, :, None, None], "VALID")
    o = bn(o, p["s3"], p["b3"]) + x.astype(jnp.float32)
    return jax.nn.relu(o)


# ----------------------------------- main ------------------------------------

if __name__ == "__main__":
    key = jax.random.PRNGKey(0)
    kx, kp = jax.random.split(key)

    N, H, W = 2, 16, 16
    inplanes, planes = 64, 16        # width = 16, out channels = 64 (== inplanes)
    x = jax.random.normal(kx, (N, inplanes, H, W), jnp.float32)
    params = make_params(kp, inplanes, planes)

    # 1) exact-semantics path: f32 matmuls vs pure-f32 reference (tight tol)
    pp_f32 = prepare_params(params, jnp.float32)
    out_f32 = jax.block_until_ready(bottleneck_forward(x, pp_f32))
    ref_f32 = jax.block_until_ready(bottleneck_ref(x, params, jnp.float32))
    assert out_f32.shape == (N, planes * 4, H, W)
    assert jnp.allclose(out_f32, ref_f32, atol=1e-3, rtol=1e-3), \
        float(jnp.max(jnp.abs(out_f32 - ref_f32)))

    # 2) fast path: bf16 MXU operands (f32 accumulation, f32 I/O) vs a
    #    reference using the identical precision policy.
    pp_bf = prepare_params(params, jnp.bfloat16)
    out_bf = jax.block_until_ready(bottleneck_forward(x, pp_bf))
    ref_bf = jax.block_until_ready(bottleneck_ref(x, params, jnp.bfloat16))
    assert out_bf.shape == (N, planes * 4, H, W)
    assert jnp.allclose(out_bf, ref_bf, atol=2e-2, rtol=2e-2), \
        float(jnp.max(jnp.abs(out_bf - ref_bf)))

    # 3) bf16 activation-I/O path (NHWC, halved HBM traffic for v5e/v6e).
    x_nhwc_bf = jnp.transpose(x, (0, 2, 3, 1)).astype(jnp.bfloat16)
    out_io = jax.block_until_ready(bottleneck_forward_nhwc(x_nhwc_bf, pp_bf))
    ref_io = bottleneck_ref(jnp.transpose(x_nhwc_bf, (0, 3, 1, 2)),
                            params, jnp.bfloat16)
    ref_io = jnp.transpose(ref_io, (0, 2, 3, 1))
    assert out_io.dtype == jnp.bfloat16 and out_io.shape == (N, H, W, planes * 4)
    assert jnp.allclose(out_io.astype(jnp.float32), ref_io,
                        atol=5e-2, rtol=5e-2), \
        float(jnp.max(jnp.abs(out_io.astype(jnp.float32) - ref_io)))

    print("KERNEL_OK")
</pallas_src>

<mosaic_0001>
module attributes {stable_mosaic.version = 11 : i64} {
  func.func @bottleneck_kernel(%arg0: i32, %arg1: memref<1x16x16x64xf32, #tpu.memory_space<vmem>>, %arg2: memref<64x16xf32, #tpu.memory_space<vmem>>, %arg3: memref<1x16xf32, #tpu.memory_space<vmem>>, %arg4: memref<1x16xf32, #tpu.memory_space<vmem>>, %arg5: memref<3x48x16xf32, #tpu.memory_space<vmem>>, %arg6: memref<1x16xf32, #tpu.memory_space<vmem>>, %arg7: memref<1x16xf32, #tpu.memory_space<vmem>>, %arg8: memref<16x64xf32, #tpu.memory_space<vmem>>, %arg9: memref<1x64xf32, #tpu.memory_space<vmem>>, %arg10: memref<1x64xf32, #tpu.memory_space<vmem>>, %arg11: memref<1x16x16x64xf32, #tpu.memory_space<vmem>>, %arg12: memref<18x16x48xf32, #tpu.memory_space<vmem>>) attributes {dimension_semantics = [#tpu.dimension_semantics<parallel>], iteration_bounds = array<i64: 2>, scalar_prefetch = 0 : i64, scratch_operands = 1 : i64, tpu.core_type = #tpu.core_type<tc>, window_params = [{transform_indices = @transform_0, window_bounds = array<i64: 1, 16, 16, 64>}, {pipeline_mode = #tpu.pipeline_mode<synchronous>, transform_indices = @transform_1, window_bounds = array<i64: 64, 16>}, {pipeline_mode = #tpu.pipeline_mode<synchronous>, transform_indices = @transform_2, window_bounds = array<i64: 1, 16>}, {pipeline_mode = #tpu.pipeline_mode<synchronous>, transform_indices = @transform_3, window_bounds = array<i64: 1, 16>}, {pipeline_mode = #tpu.pipeline_mode<synchronous>, transform_indices = @transform_4, window_bounds = array<i64: 3, 48, 16>}, {pipeline_mode = #tpu.pipeline_mode<synchronous>, transform_indices = @transform_5, window_bounds = array<i64: 1, 16>}, {pipeline_mode = #tpu.pipeline_mode<synchronous>, transform_indices = @transform_6, window_bounds = array<i64: 1, 16>}, {pipeline_mode = #tpu.pipeline_mode<synchronous>, transform_indices = @transform_7, window_bounds = array<i64: 16, 64>}, {pipeline_mode = #tpu.pipeline_mode<synchronous>, transform_indices = @transform_8, window_bounds = array<i64: 1, 64>}, {pipeline_mode = #tpu.pipeline_mode<synchronous>, transform_indices = @transform_9, window_bounds = array<i64: 1, 64>}, {transform_indices = @transform_10, window_bounds = array<i64: 1, 16, 16, 64>}]} {
    %c0 = arith.constant 0 : index
    %c0_0 = arith.constant 0 : index
    %c0_1 = arith.constant 0 : index
    %c0_2 = arith.constant 0 : index
    %0 = vector.load %arg1[%c0, %c0_0, %c0_1, %c0_2] : memref<1x16x16x64xf32, #tpu.memory_space<vmem>>, vector<1x16x16x64xf32>
    %1 = vector.shape_cast %0 : vector<1x16x16x64xf32> to vector<256x64xf32>
    %c0_3 = arith.constant 0 : index
    %c0_4 = arith.constant 0 : index
    %2 = vector.load %arg2[%c0_3, %c0_4] : memref<64x16xf32, #tpu.memory_space<vmem>>, vector<64x16xf32>
    %cst = arith.constant dense<0.000000e+00> : vector<256x16xf32>
    %3 = tpu.matmul %1, %2, %cst {dimension_numbers = #tpu.dot_dimension_numbers<[1], [0], [0], [1], [0, 0, 1, 1], [], []>} : vector<256x64xf32>, vector<64x16xf32>, vector<256x16xf32> -> vector<256x16xf32>
    %c0_5 = arith.constant 0 : index
    %c0_6 = arith.constant 0 : index
    %4 = vector.load %arg3[%c0_5, %c0_6] : memref<1x16xf32, #tpu.memory_space<vmem>>, vector<1x16xf32>
    %5 = vector.broadcast %4 : vector<1x16xf32> to vector<256x16xf32>
    %6 = arith.mulf %3, %5 : vector<256x16xf32>
    %c0_7 = arith.constant 0 : index
    %c0_8 = arith.constant 0 : index
    %7 = vector.load %arg4[%c0_7, %c0_8] : memref<1x16xf32, #tpu.memory_space<vmem>>, vector<1x16xf32>
    %8 = vector.broadcast %7 : vector<1x16xf32> to vector<256x16xf32>
    %9 = arith.addf %6, %8 : vector<256x16xf32>
    %cst_9 = arith.constant 0.000000e+00 : f32
    %10 = vector.broadcast %cst_9 : f32 to vector<256x16xf32>
    %11 = arith.maximumf %9, %10 : vector<256x16xf32>
    %c1_i32 = arith.constant 1 : i32
    %12 = tpu.dynamic_rotate %11 by %c1_i32 dim 0 : vector<256x16xf32>, i32 -> vector<256x16xf32>
    %c255_i32 = arith.constant 255 : i32
    %13 = tpu.dynamic_rotate %11 by %c255_i32 dim 0 : vector<256x16xf32>, i32 -> vector<256x16xf32>
    %14 = tpu.iota {dimensions = array<i32: 1>} : vector<16x16x16xi32>
    %c0_i32 = arith.constant 0 : i32
    %15 = vector.broadcast %c0_i32 : i32 to vector<16x16x16xi32>
    %16 = arith.cmpi eq, %14, %15 : vector<16x16x16xi32>
    %17 = vector.shape_cast %12 : vector<256x16xf32> to vector<16x16x16xf32>
    %cst_10 = arith.constant 0.000000e+00 : f32
    %18 = vector.broadcast %cst_10 : f32 to vector<16x16x16xf32>
    %19 = arith.select %16, %18, %17 : vector<16x16x16xi1>, vector<16x16x16xf32>
    %c15_i32 = arith.constant 15 : i32
    %20 = vector.broadcast %c15_i32 : i32 to vector<16x16x16xi32>
    %21 = arith.cmpi eq, %14, %20 : vector<16x16x16xi32>
    %22 = vector.shape_cast %13 : vector<256x16xf32> to vector<16x16x16xf32>
    %cst_11 = arith.constant 0.000000e+00 : f32
    %23 = vector.broadcast %cst_11 : f32 to vector<16x16x16xf32>
    %24 = arith.select %21, %23, %22 : vector<16x16x16xi1>, vector<16x16x16xf32>
    %25 = vector.shape_cast %11 : vector<256x16xf32> to vector<16x16x16xf32>
    %26 = tpu.concatenate %19, %25, %24 in 2 : vector<16x16x16xf32>, vector<16x16x16xf32>, vector<16x16x16xf32> -> vector<16x16x48xf32>
    %cst_12 = arith.constant 0.000000e+00 : f32
    %27 = vector.broadcast %cst_12 : f32 to vector<16x48xf32>
    %c0_13 = arith.constant 0 : index
    %c0_14 = arith.constant 0 : index
    %c0_15 = arith.constant 0 : index
    %28 = vector.load %arg12[%c0_13, %c0_14, %c0_15] : memref<18x16x48xf32, #tpu.memory_space<vmem>>, vector<1x16x48xf32>
    %29 = vector.shape_cast %28 : vector<1x16x48xf32> to vector<16x48xf32>
    %30 = vector.shape_cast %27 : vector<16x48xf32> to vector<1x16x48xf32>
    tpu.vector_store %arg12[%c0_13, %c0_14, %c0_15], %30 {strides = array<i32>} : memref<18x16x48xf32, #tpu.memory_space<vmem>>, vector<1x16x48xf32>,
    %cst_16 = arith.constant 0.000000e+00 : f32
    %31 = vector.broadcast %cst_16 : f32 to vector<16x48xf32>
    %c17 = arith.constant 17 : index
    %c0_17 = arith.constant 0 : index
    %c0_18 = arith.constant 0 : index
    %32 = vector.load %arg12[%c17, %c0_17, %c0_18] : memref<18x16x48xf32, #tpu.memory_space<vmem>>, vector<1x16x48xf32>
    %33 = vector.shape_cast %32 : vector<1x16x48xf32> to vector<16x48xf32>
    %34 = vector.shape_cast %31 : vector<16x48xf32> to vector<1x16x48xf32>
    tpu.vector_store %arg12[%c17, %c0_17, %c0_18], %34 {strides = array<i32>} : memref<18x16x48xf32, #tpu.memory_space<vmem>>, vector<1x16x48xf32>,
    %c1 = arith.constant 1 : index
    %c0_19 = arith.constant 0 : index
    %c0_20 = arith.constant 0 : index
    %35 = vector.load %arg12[%c1, %c0_19, %c0_20] : memref<18x16x48xf32, #tpu.memory_space<vmem>>, vector<16x16x48xf32>
    tpu.vector_store %arg12[%c1, %c0_19, %c0_20], %26 {strides = array<i32>} : memref<18x16x48xf32, #tpu.memory_space<vmem>>, vector<16x16x48xf32>,
    %cst_21 = arith.constant 0.000000e+00 : f32
    %36 = vector.broadcast %cst_21 : f32 to vector<256x16xf32>
    %c0_22 = arith.constant 0 : index
    %c0_23 = arith.constant 0 : index
    %c0_24 = arith.constant 0 : index
    %37 = vector.load %arg12[%c0_22, %c0_23, %c0_24] : memref<18x16x48xf32, #tpu.memory_space<vmem>>, vector<16x16x48xf32>
    %38 = vector.shape_cast %37 : vector<16x16x48xf32> to vector<256x48xf32>
    %c0_25 = arith.constant 0 : index
    %c0_26 = arith.constant 0 : index
    %c0_27 = arith.constant 0 : index
    %39 = vector.load %arg5[%c0_25, %c0_26, %c0_27] : memref<3x48x16xf32, #tpu.memory_space<vmem>>, vector<1x48x16xf32>
    %40 = vector.shape_cast %39 : vector<1x48x16xf32> to vector<48x16xf32>
    %cst_28 = arith.constant dense<0.000000e+00> : vector<256x16xf32>
    %41 = tpu.matmul %38, %40, %cst_28 {dimension_numbers = #tpu.dot_dimension_numbers<[1], [0], [0], [1], [0, 0, 1, 1], [], []>} : vector<256x48xf32>, vector<48x16xf32>, vector<256x16xf32> -> vector<256x16xf32>
    %42 = arith.addf %36, %41 : vector<256x16xf32>
    %c1_29 = arith.constant 1 : index
    %c0_30 = arith.constant 0 : index
    %c0_31 = arith.constant 0 : index
    %43 = vector.load %arg12[%c1_29, %c0_30, %c0_31] : memref<18x16x48xf32, #tpu.memory_space<vmem>>, vector<16x16x48xf32>
    %44 = vector.shape_cast %43 : vector<16x16x48xf32> to vector<256x48xf32>
    %c1_32 = arith.constant 1 : index
    %c0_33 = arith.constant 0 : index
    %c0_34 = arith.constant 0 : index
    %45 = vector.load %arg5[%c1_32, %c0_33, %c0_34] : memref<3x48x16xf32, #tpu.memory_space<vmem>>, vector<1x48x16xf32>
    %46 = vector.shape_cast %45 : vector<1x48x16xf32> to vector<48x16xf32>
    %cst_35 = arith.constant dense<0.000000e+00> : vector<256x16xf32>
    %47 = tpu.matmul %44, %46, %cst_35 {dimension_numbers = #tpu.dot_dimension_numbers<[1], [0], [0], [1], [0, 0, 1, 1], [], []>} : vector<256x48xf32>, vector<48x16xf32>, vector<256x16xf32> -> vector<256x16xf32>
    %48 = arith.addf %42, %47 : vector<256x16xf32>
    %c2 = arith.constant 2 : index
    %c0_36 = arith.constant 0 : index
    %c0_37 = arith.constant 0 : index
    %49 = vector.load %arg12[%c2, %c0_36, %c0_37] : memref<18x16x48xf32, #tpu.memory_space<vmem>>, vector<16x16x48xf32>
    %50 = vector.shape_cast %49 : vector<16x16x48xf32> to vector<256x48xf32>
    %c2_38 = arith.constant 2 : index
    %c0_39 = arith.constant 0 : index
    %c0_40 = arith.constant 0 : index
    %51 = vector.load %arg5[%c2_38, %c0_39, %c0_40] : memref<3x48x16xf32, #tpu.memory_space<vmem>>, vector<1x48x16xf32>
    %52 = vector.shape_cast %51 : vector<1x48x16xf32> to vector<48x16xf32>
    %cst_41 = arith.constant dense<0.000000e+00> : vector<256x16xf32>
    %53 = tpu.matmul %50, %52, %cst_41 {dimension_numbers = #tpu.dot_dimension_numbers<[1], [0], [0], [1], [0, 0, 1, 1], [], []>} : vector<256x48xf32>, vector<48x16xf32>, vector<256x16xf32> -> vector<256x16xf32>
    %54 = arith.addf %48, %53 : vector<256x16xf32>
    %c0_42 = arith.constant 0 : index
    %c0_43 = arith.constant 0 : index
    %55 = vector.load %arg6[%c0_42, %c0_43] : memref<1x16xf32, #tpu.memory_space<vmem>>, vector<1x16xf32>
    %56 = vector.broadcast %55 : vector<1x16xf32> to vector<256x16xf32>
    %57 = arith.mulf %54, %56 : vector<256x16xf32>
    %c0_44 = arith.constant 0 : index
    %c0_45 = arith.constant 0 : index
    %58 = vector.load %arg7[%c0_44, %c0_45] : memref<1x16xf32, #tpu.memory_space<vmem>>, vector<1x16xf32>
    %59 = vector.broadcast %58 : vector<1x16xf32> to vector<256x16xf32>
    %60 = arith.addf %57, %59 : vector<256x16xf32>
    %cst_46 = arith.constant 0.000000e+00 : f32
    %61 = vector.broadcast %cst_46 : f32 to vector<256x16xf32>
    %62 = arith.maximumf %60, %61 : vector<256x16xf32>
    %c0_47 = arith.constant 0 : index
    %c0_48 = arith.constant 0 : index
    %63 = vector.load %arg8[%c0_47, %c0_48] : memref<16x64xf32, #tpu.memory_space<vmem>>, vector<16x64xf32>
    %cst_49 = arith.constant dense<0.000000e+00> : vector<256x64xf32>
    %64 = tpu.matmul %62, %63, %cst_49 {dimension_numbers = #tpu.dot_dimension_numbers<[1], [0], [0], [1], [0, 0, 1, 1], [], []>} : vector<256x16xf32>, vector<16x64xf32>, vector<256x64xf32> -> vector<256x64xf32>
    %c0_50 = arith.constant 0 : index
    %c0_51 = arith.constant 0 : index
    %65 = vector.load %arg9[%c0_50, %c0_51] : memref<1x64xf32, #tpu.memory_space<vmem>>, vector<1x64xf32>
    %66 = vector.broadcast %65 : vector<1x64xf32> to vector<256x64xf32>
    %67 = arith.mulf %64, %66 : vector<256x64xf32>
    %c0_52 = arith.constant 0 : index
    %c0_53 = arith.constant 0 : index
    %68 = vector.load %arg10[%c0_52, %c0_53] : memref<1x64xf32, #tpu.memory_space<vmem>>, vector<1x64xf32>
    %69 = vector.broadcast %68 : vector<1x64xf32> to vector<256x64xf32>
    %70 = arith.addf %67, %69 : vector<256x64xf32>
    %c0_54 = arith.constant 0 : index
    %c0_55 = arith.constant 0 : index
    %c0_56 = arith.constant 0 : index
    %c0_57 = arith.constant 0 : index
    %71 = vector.load %arg1[%c0_54, %c0_55, %c0_56, %c0_57] : memref<1x16x16x64xf32, #tpu.memory_space<vmem>>, vector<1x16x16x64xf32>
    %72 = vector.shape_cast %71 : vector<1x16x16x64xf32> to vector<256x64xf32>
    %73 = arith.addf %70, %72 : vector<256x64xf32>
    %cst_58 = arith.constant 0.000000e+00 : f32
    %74 = vector.broadcast %cst_58 : f32 to vector<256x64xf32>
    %75 = arith.maximumf %73, %74 : vector<256x64xf32>
    %76 = vector.shape_cast %75 : vector<256x64xf32> to vector<1x16x16x64xf32>
    %c0_59 = arith.constant 0 : index
    %c0_60 = arith.constant 0 : index
    %c0_61 = arith.constant 0 : index
    %c0_62 = arith.constant 0 : index
    %77 = vector.load %arg11[%c0_59, %c0_60, %c0_61, %c0_62] : memref<1x16x16x64xf32, #tpu.memory_space<vmem>>, vector<1x16x16x64xf32>
    tpu.vector_store %arg11[%c0_59, %c0_60, %c0_61, %c0_62], %76 {strides = array<i32>} : memref<1x16x16x64xf32, #tpu.memory_space<vmem>>, vector<1x16x16x64xf32>,
    return
  }
  func.func @transform_0(%arg0: i32) -> (i32, i32, i32, i32) {
    %c0_i32 = arith.constant 0 : i32
    %c0_i32_0 = arith.constant 0 : i32
    %c0_i32_1 = arith.constant 0 : i32
    %c0_i32_2 = arith.constant 0 : i32
    return %arg0, %c0_i32, %c0_i32_0, %c0_i32_1 : i32, i32, i32, i32
  }
  func.func @transform_1(%arg0: i32) -> (i32, i32) {
    %c0_i32 = arith.constant 0 : i32
    %c0_i32_0 = arith.constant 0 : i32
    %c0_i32_1 = arith.constant 0 : i32
    return %c0_i32, %c0_i32_0 : i32, i32
  }
  func.func @transform_2(%arg0: i32) -> (i32, i32) {
    %c0_i32 = arith.constant 0 : i32
    %c0_i32_0 = arith.constant 0 : i32
    %c0_i32_1 = arith.constant 0 : i32
    return %c0_i32, %c0_i32_0 : i32, i32
  }
  func.func @transform_3(%arg0: i32) -> (i32, i32) {
    %c0_i32 = arith.constant 0 : i32
    %c0_i32_0 = arith.constant 0 : i32
    %c0_i32_1 = arith.constant 0 : i32
    return %c0_i32, %c0_i32_0 : i32, i32
  }
  func.func @transform_4(%arg0: i32) -> (i32, i32, i32) {
    %c0_i32 = arith.constant 0 : i32
    %c0_i32_0 = arith.constant 0 : i32
    %c0_i32_1 = arith.constant 0 : i32
    %c0_i32_2 = arith.constant 0 : i32
    return %c0_i32, %c0_i32_0, %c0_i32_1 : i32, i32, i32
  }
  func.func @transform_5(%arg0: i32) -> (i32, i32) {
    %c0_i32 = arith.constant 0 : i32
    %c0_i32_0 = arith.constant 0 : i32
    %c0_i32_1 = arith.constant 0 : i32
    return %c0_i32, %c0_i32_0 : i32, i32
  }
  func.func @transform_6(%arg0: i32) -> (i32, i32) {
    %c0_i32 = arith.constant 0 : i32
    %c0_i32_0 = arith.constant 0 : i32
    %c0_i32_1 = arith.constant 0 : i32
    return %c0_i32, %c0_i32_0 : i32, i32
  }
  func.func @transform_7(%arg0: i32) -> (i32, i32) {
    %c0_i32 = arith.constant 0 : i32
    %c0_i32_0 = arith.constant 0 : i32
    %c0_i32_1 = arith.constant 0 : i32
    return %c0_i32, %c0_i32_0 : i32, i32
  }
  func.func @transform_8(%arg0: i32) -> (i32, i32) {
    %c0_i32 = arith.constant 0 : i32
    %c0_i32_0 = arith.constant 0 : i32
    %c0_i32_1 = arith.constant 0 : i32
    return %c0_i32, %c0_i32_0 : i32, i32
  }
  func.func @transform_9(%arg0: i32) -> (i32, i32) {
    %c0_i32 = arith.constant 0 : i32
    %c0_i32_0 = arith.constant 0 : i32
    %c0_i32_1 = arith.constant 0 : i32
    return %c0_i32, %c0_i32_0 : i32, i32
  }
  func.func @transform_10(%arg0: i32) -> (i32, i32, i32, i32) {
    %c0_i32 = arith.constant 0 : i32
    %c0_i32_0 = arith.constant 0 : i32
    %c0_i32_1 = arith.constant 0 : i32
    %c0_i32_2 = arith.constant 0 : i32
    return %arg0, %c0_i32, %c0_i32_0, %c0_i32_1 : i32, i32, i32, i32
  }
}

</mosaic_0001>

<llo_original>
// kernel: tpu_custom_call.1
$region0: #{tpu_custom_call.1}
  #allocation0 [shape = 'u32[]', space=smem, size = 0x4, offset = 0x4, fixed_abs, tag = 'smem constant byte address 0x4 - core index']
  #allocation1 [shape = 'u32[72,128]{1,0:T(1,128)}', space=vmem, size = 0x9000, scoped, tag = 'internal scratch']
  #allocation2 [shape = 'f32[18,16,48]{2,1,0:T(8,128)}', space=vmem, size = 0x24000, scoped, tag = 'scratch operand']
  %s0 = inlined_call_operand.hbm [shape: f32[2,16,16,64], index: 0, kind: input, shape index: {}]
  %s1 = inlined_call_operand.vmem [shape: f32[64,16], index: 1, kind: input, shape index: {}]
  %s2 = inlined_call_operand.vmem [shape: f32[1,16], index: 2, kind: input, shape index: {}]
  %s3 = inlined_call_operand.vmem [shape: f32[1,16], index: 3, kind: input, shape index: {}]
  %s4 = inlined_call_operand.vmem [shape: f32[3,48,16], index: 4, kind: input, shape index: {}]
  %s5 = inlined_call_operand.vmem [shape: f32[1,16], index: 5, kind: input, shape index: {}]
  %s6 = inlined_call_operand.vmem [shape: f32[1,16], index: 6, kind: input, shape index: {}]
  %s7 = inlined_call_operand.vmem [shape: f32[16,64], index: 7, kind: input, shape index: {}]
  %s8 = inlined_call_operand.vmem [shape: f32[1,64], index: 8, kind: input, shape index: {}]
  %s9 = inlined_call_operand.vmem [shape: f32[1,64], index: 9, kind: input, shape index: {}]
  %s10 = inlined_call_operand.hbm [shape: f32[2,16,16,64], index: 10, kind: output, shape index: {}]
  %s11 = sld [smem:[#allocation0]]
  $region77: #{tpu_custom_call.1} parent=0
    _
  %s13 = ssub.s32 1, %s11
  %s14 = scalar_select 0, %s13, %s11
  $region1: #{tpu_custom_call.1} parent=0
    #allocation3 [shape = 'u8[262144]{0}', space=vmem, size = 0x40000, scoped, tag = 'input window, operand 0']
    #allocation4 [shape = 's32[2]{0}', space=sflag, size = 0x8, scoped, tag = 'scoped memory for tpu_custom_call.1']
    #allocation5 [shape = 's32[2]{0}', space=sflag, size = 0x8, scoped, tag = 'scoped memory for tpu_custom_call.1']
    #allocation6 [shape = 'u8[262144]{0}', space=vmem, size = 0x40000, scoped, tag = 'output window, operand 0']
    %15 = vsyncpa [#allocation4], 0
    %s16 = scalar_lea.sflag [#allocation4], 1
    %17 = vsyncpa %s16, 0
    %18 = vsyncpa [#allocation5], 0
    %s19 = scalar_lea.sflag [#allocation5], 1
    %20 = vsyncpa %s19, 0
    loop: start=0, step=1, limit=4
    $region2: #{tpu_custom_call.1} parent=1 // loop_pre_header
      _
    $region3: #{tpu_custom_call.1} parent=1 // loop_header
      %s22 = sphi 0, %s26
      %p23 = scmp.ge.s32.totalorder %s22, 4
      %s32 = sphi 0, %s34
      %s35 = sphi 0, %s32
      %s36 = sphi 0, %s35
      %s52 = sphi 0, %s36
      %s56 = sphi 0, %s56
      %s58 = sphi 0, %s56
      %s59 = sphi 0, %s58
      %s73 = sphi 0, %s59
      %s77 = sphi 0, %s77
      %s79 = sphi 0, %s77
      %s80 = sphi 0, %s79
      %s94 = sphi 0, %s80
      %s98 = sphi 0, %s98
      %s100 = sphi 0, %s98
      %s101 = sphi 0, %s100
      %s115 = sphi 0, %s101
      %s119 = sphi 0, %s119
      %s121 = sphi 0, %s119
      %s122 = sphi 0, %s121
      %s136 = sphi 0, %s122
      %s140 = sphi 0, %s140
      %s142 = sphi 0, %s140
      %s143 = sphi 0, %s142
      %s157 = sphi 0, %s143
      %s161 = sphi 0, %s161
      %s163 = sphi 0, %s161
      %s164 = sphi 0, %s163
      %s178 = sphi 0, %s164
      %s182 = sphi 0, %s182
      %s184 = sphi 0, %s182
      %s185 = sphi 0, %s184
      %s199 = sphi 0, %s185
      %s203 = sphi 0, %s203
      %s205 = sphi 0, %s203
      %s206 = sphi 0, %s205
      %s220 = sphi 0, %s206
      %s224 = sphi 0, %s224
      %s226 = sphi 0, %s224
      %s227 = sphi 0, %s226
      %s241 = sphi 0, %s227
      %s247 = sphi 0, %s249
      %s250 = sphi 0, %s247
      %s251 = sphi 0, %s250
      %s267 = sphi 0, %s251
    $region4: #{tpu_custom_call.1} parent=1 // loop_header_branch
      %25 = sbr.rel (%p23) target = $region8
    $region5: #{tpu_custom_call.1} parent=1 // loop_body
      %s27 = ssub.s32 %s22, 1
      %s28 = ssub.s32 %s22, 2
      %s29 = sadd.s32 %s22, 1
      %s30 = ssub.s32 %s22, %s29
      %p31 = scmp.eq.s32.totalorder %s30, 0
      %s33 = sadd.s32 %s32, 1
      %s34 = scalar_select %p31, %s32, %s33
      %p37 = pneg %p31
      %p38 = scmp.eq.s32.totalorder %s22, 1
      %p39 = por %p37, %p38
      %p40 = scmp.ne.s32.totalorder %s32, %s35
      %p41 = scmp.eq.s32.totalorder %s22, 0
      %p42 = por %p40, %p41
      %p43 = scmp.ne.s32.totalorder %s32, %s35
      %p44 = scmp.eq.s32.totalorder %s27, 1
      %p45 = por %p43, %p44
      %p46 = scmp.ne.s32.totalorder %s35, %s36
      %p47 = scmp.eq.s32.totalorder %s27, 0
      %p48 = por %p46, %p47
      %p49 = scmp.ne.s32.totalorder %s35, %s36
      %p50 = scmp.eq.s32.totalorder %s28, 1
      %p51 = por %p49, %p50
      %p53 = scmp.ne.s32.totalorder %s36, %s52
      %p54 = scmp.eq.s32.totalorder %s28, 0
      %p55 = por %p53, %p54
      %s57 = sadd.s32 %s56, 1
      %p60 = scmp.eq.s32.totalorder %s22, 1
      %p61 = scmp.ne.s32.totalorder %s56, %s58
      %p62 = scmp.eq.s32.totalorder %s22, 0
      %p63 = por %p61, %p62
      %p64 = scmp.ne.s32.totalorder %s56, %s58
      %p65 = scmp.eq.s32.totalorder %s27, 1
      %p66 = por %p64, %p65
      %p67 = scmp.ne.s32.totalorder %s58, %s59
      %p68 = scmp.eq.s32.totalorder %s27, 0
      %p69 = por %p67, %p68
      %p70 = scmp.ne.s32.totalorder %s58, %s59
      %p71 = scmp.eq.s32.totalorder %s28, 1
      %p72 = por %p70, %p71
      %p74 = scmp.ne.s32.totalorder %s59, %s73
      %p75 = scmp.eq.s32.totalorder %s28, 0
      %p76 = por %p74, %p75
      %s78 = sadd.s32 %s77, 1
      %p81 = scmp.eq.s32.totalorder %s22, 1
      %p82 = scmp.ne.s32.totalorder %s77, %s79
      %p83 = scmp.eq.s32.totalorder %s22, 0
      %p84 = por %p82, %p83
      %p85 = scmp.ne.s32.totalorder %s77, %s79
      %p86 = scmp.eq.s32.totalorder %s27, 1
      %p87 = por %p85, %p86
      %p88 = scmp.ne.s32.totalorder %s79, %s80
      %p89 = scmp.eq.s32.totalorder %s27, 0
      %p90 = por %p88, %p89
      %p91 = scmp.ne.s32.totalorder %s79, %s80
      %p92 = scmp.eq.s32.totalorder %s28, 1
      %p93 = por %p91, %p92
      %p95 = scmp.ne.s32.totalorder %s80, %s94
      %p96 = scmp.eq.s32.totalorder %s28, 0
      %p97 = por %p95, %p96
      %s99 = sadd.s32 %s98, 1
      %p102 = scmp.eq.s32.totalorder %s22, 1
      %p103 = scmp.ne.s32.totalorder %s98, %s100
      %p104 = scmp.eq.s32.totalorder %s22, 0
      %p105 = por %p103, %p104
      %p106 = scmp.ne.s32.totalorder %s98, %s100
      %p107 = scmp.eq.s32.totalorder %s27, 1
      %p108 = por %p106, %p107
      %p109 = scmp.ne.s32.totalorder %s100, %s101
      %p110 = scmp.eq.s32.totalorder %s27, 0
      %p111 = por %p109, %p110
      %p112 = scmp.ne.s32.totalorder %s100, %s101
      %p113 = scmp.eq.s32.totalorder %s28, 1
      %p114 = por %p112, %p113
      %p116 = scmp.ne.s32.totalorder %s101, %s115
      %p117 = scmp.eq.s32.totalorder %s28, 0
      %p118 = por %p116, %p117
      %s120 = sadd.s32 %s119, 1
      %p123 = scmp.eq.s32.totalorder %s22, 1
      %p124 = scmp.ne.s32.totalorder %s119, %s121
      %p125 = scmp.eq.s32.totalorder %s22, 0
      %p126 = por %p124, %p125
      %p127 = scmp.ne.s32.totalorder %s119, %s121
      %p128 = scmp.eq.s32.totalorder %s27, 1
      %p129 = por %p127, %p128
      %p130 = scmp.ne.s32.totalorder %s121, %s122
      %p131 = scmp.eq.s32.totalorder %s27, 0
      %p132 = por %p130, %p131
      %p133 = scmp.ne.s32.totalorder %s121, %s122
      %p134 = scmp.eq.s32.totalorder %s28, 1
      %p135 = por %p133, %p134
      %p137 = scmp.ne.s32.totalorder %s122, %s136
      %p138 = scmp.eq.s32.totalorder %s28, 0
      %p139 = por %p137, %p138
      %s141 = sadd.s32 %s140, 1
      %p144 = scmp.eq.s32.totalorder %s22, 1
      %p145 = scmp.ne.s32.totalorder %s140, %s142
      %p146 = scmp.eq.s32.totalorder %s22, 0
      %p147 = por %p145, %p146
      %p148 = scmp.ne.s32.totalorder %s140, %s142
      %p149 = scmp.eq.s32.totalorder %s27, 1
      %p150 = por %p148, %p149
      %p151 = scmp.ne.s32.totalorder %s142, %s143
      %p152 = scmp.eq.s32.totalorder %s27, 0
      %p153 = por %p151, %p152
      %p154 = scmp.ne.s32.totalorder %s142, %s143
      %p155 = scmp.eq.s32.totalorder %s28, 1
      %p156 = por %p154, %p155
      %p158 = scmp.ne.s32.totalorder %s143, %s157
      %p159 = scmp.eq.s32.totalorder %s28, 0
      %p160 = por %p158, %p159
      %s162 = sadd.s32 %s161, 1
      %p165 = scmp.eq.s32.totalorder %s22, 1
      %p166 = scmp.ne.s32.totalorder %s161, %s163
      %p167 = scmp.eq.s32.totalorder %s22, 0
      %p168 = por %p166, %p167
      %p169 = scmp.ne.s32.totalorder %s161, %s163
      %p170 = scmp.eq.s32.totalorder %s27, 1
      %p171 = por %p169, %p170
      %p172 = scmp.ne.s32.totalorder %s163, %s164
      %p173 = scmp.eq.s32.totalorder %s27, 0
      %p174 = por %p172, %p173
      %p175 = scmp.ne.s32.totalorder %s163, %s164
      %p176 = scmp.eq.s32.totalorder %s28, 1
      %p177 = por %p175, %p176
      %p179 = scmp.ne.s32.totalorder %s164, %s178
      %p180 = scmp.eq.s32.totalorder %s28, 0
      %p181 = por %p179, %p180
      %s183 = sadd.s32 %s182, 1
      %p186 = scmp.eq.s32.totalorder %s22, 1
      %p187 = scmp.ne.s32.totalorder %s182, %s184
      %p188 = scmp.eq.s32.totalorder %s22, 0
      %p189 = por %p187, %p188
      %p190 = scmp.ne.s32.totalorder %s182, %s184
      %p191 = scmp.eq.s32.totalorder %s27, 1
      %p192 = por %p190, %p191
      %p193 = scmp.ne.s32.totalorder %s184, %s185
      %p194 = scmp.eq.s32.totalorder %s27, 0
      %p195 = por %p193, %p194
      %p196 = scmp.ne.s32.totalorder %s184, %s185
      %p197 = scmp.eq.s32.totalorder %s28, 1
      %p198 = por %p196, %p197
      %p200 = scmp.ne.s32.totalorder %s185, %s199
      %p201 = scmp.eq.s32.totalorder %s28, 0
      %p202 = por %p200, %p201
      %s204 = sadd.s32 %s203, 1
      %p207 = scmp.eq.s32.totalorder %s22, 1
      %p208 = scmp.ne.s32.totalorder %s203, %s205
      %p209 = scmp.eq.s32.totalorder %s22, 0
      %p210 = por %p208, %p209
      %p211 = scmp.ne.s32.totalorder %s203, %s205
      %p212 = scmp.eq.s32.totalorder %s27, 1
      %p213 = por %p211, %p212
      %p214 = scmp.ne.s32.totalorder %s205, %s206
      %p215 = scmp.eq.s32.totalorder %s27, 0
      %p216 = por %p214, %p215
      %p217 = scmp.ne.s32.totalorder %s205, %s206
      %p218 = scmp.eq.s32.totalorder %s28, 1
      %p219 = por %p217, %p218
      %p221 = scmp.ne.s32.totalorder %s206, %s220
      %p222 = scmp.eq.s32.totalorder %s28, 0
      %p223 = por %p221, %p222
      %s225 = sadd.s32 %s224, 1
      %p228 = scmp.eq.s32.totalorder %s22, 1
      %p229 = scmp.ne.s32.totalorder %s224, %s226
      %p230 = scmp.eq.s32.totalorder %s22, 0
      %p231 = por %p229, %p230
      %p232 = scmp.ne.s32.totalorder %s224, %s226
      %p233 = scmp.eq.s32.totalorder %s27, 1
      %p234 = por %p232, %p233
      %p235 = scmp.ne.s32.totalorder %s226, %s227
      %p236 = scmp.eq.s32.totalorder %s27, 0
      %p237 = por %p235, %p236
      %p238 = scmp.ne.s32.totalorder %s226, %s227
      %p239 = scmp.eq.s32.totalorder %s28, 1
      %p240 = por %p238, %p239
      %p242 = scmp.ne.s32.totalorder %s227, %s241
      %p243 = scmp.eq.s32.totalorder %s28, 0
      %p244 = por %p242, %p243
      %s245 = ssub.s32 %s22, %s29
      %p246 = scmp.eq.s32.totalorder %s245, 0
      %s248 = sadd.s32 %s247, 1
      %s249 = scalar_select %p246, %s247, %s248
      %p252 = pneg %p246
      %p253 = scmp.eq.s32.totalorder %s22, 1
      %p254 = por %p252, %p253
      %p255 = scmp.ne.s32.totalorder %s247, %s250
      %p256 = scmp.eq.s32.totalorder %s22, 0
      %p257 = por %p255, %p256
      %p258 = scmp.ne.s32.totalorder %s247, %s250
      %p259 = scmp.eq.s32.totalorder %s27, 1
      %p260 = por %p258, %p259
      %p261 = scmp.ne.s32.totalorder %s250, %s251
      %p262 = scmp.eq.s32.totalorder %s27, 0
      %p263 = por %p261, %p262
      %p264 = scmp.ne.s32.totalorder %s250, %s251
      %p265 = scmp.eq.s32.totalorder %s28, 1
      %p266 = por %p264, %p265
      %p268 = scmp.ne.s32.totalorder %s251, %s267
      %p269 = scmp.eq.s32.totalorder %s28, 0
      %p270 = por %p268, %p269
      %p271 = scmp.le.s32.totalorder 1, %s22
      %p272 = scmp.lt.s32.totalorder %s22, 3
      %p273 = pnand %p271, %p272
      %p274 = pneg %p273
      // Predicated region
      $region9: #{tpu_custom_call.1} parent=5 // pred_check
        _
      $region10: #{tpu_custom_call.1} parent=5 // pred_check_branch
        %276 = sbr.rel (%p273) target = $region12
      $region11: #{tpu_custom_call.1} parent=5 // pred_region
        %s277 = ssub.s32 %s22, 1
        // Predicated region
        $region13: #{tpu_custom_call.1} parent=11 // pred_check
          %p278 = pneg %p69
        $region14: #{tpu_custom_call.1} parent=11 // pred_check_branch
          %280 = sbr.rel (%p278) target = $region16
        $region15: #{tpu_custom_call.1} parent=11 // pred_region
          _
        $region16: #{tpu_custom_call.1} parent=11 // pred_fallthru
          _
        // Predicated region
        $region17: #{tpu_custom_call.1} parent=11 // pred_check
          %p281 = pneg %p90
        $region18: #{tpu_custom_call.1} parent=11 // pred_check_branch
          %283 = sbr.rel (%p281) target = $region20
        $region19: #{tpu_custom_call.1} parent=11 // pred_region
          _
        $region20: #{tpu_custom_call.1} parent=11 // pred_fallthru
          _
        // Predicated region
        $region21: #{tpu_custom_call.1} parent=11 // pred_check
          %p284 = pneg %p111
        $region22: #{tpu_custom_call.1} parent=11 // pred_check_branch
          %286 = sbr.rel (%p284) target = $region24
        $region23: #{tpu_custom_call.1} parent=11 // pred_region
          _
        $region24: #{tpu_custom_call.1} parent=11 // pred_fallthru
          _
        // Predicated region
        $region25: #{tpu_custom_call.1} parent=11 // pred_check
          %p287 = pneg %p132
        $region26: #{tpu_custom_call.1} parent=11 // pred_check_branch
          %289 = sbr.rel (%p287) target = $region28
        $region27: #{tpu_custom_call.1} parent=11 // pred_region
          _
        $region28: #{tpu_custom_call.1} parent=11 // pred_fallthru
          _
        // Predicated region
        $region29: #{tpu_custom_call.1} parent=11 // pred_check
          %p290 = pneg %p153
        $region30: #{tpu_custom_call.1} parent=11 // pred_check_branch
          %292 = sbr.rel (%p290) target = $region32
        $region31: #{tpu_custom_call.1} parent=11 // pred_region
          _
        $region32: #{tpu_custom_call.1} parent=11 // pred_fallthru
          _
        // Predicated region
        $region33: #{tpu_custom_call.1} parent=11 // pred_check
          %p293 = pneg %p174
        $region34: #{tpu_custom_call.1} parent=11 // pred_check_branch
          %295 = sbr.rel (%p293) target = $region36
        $region35: #{tpu_custom_call.1} parent=11 // pred_region
          _
        $region36: #{tpu_custom_call.1} parent=11 // pred_fallthru
          _
        // Predicated region
        $region37: #{tpu_custom_call.1} parent=11 // pred_check
          %p296 = pneg %p195
        $region38: #{tpu_custom_call.1} parent=11 // pred_check_branch
          %298 = sbr.rel (%p296) target = $region40
        $region39: #{tpu_custom_call.1} parent=11 // pred_region
          _
        $region40: #{tpu_custom_call.1} parent=11 // pred_fallthru
          _
        // Predicated region
        $region41: #{tpu_custom_call.1} parent=11 // pred_check
          %p299 = pneg %p216
        $region42: #{tpu_custom_call.1} parent=11 // pred_check_branch
          %301 = sbr.rel (%p299) target = $region44
        $region43: #{tpu_custom_call.1} parent=11 // pred_region
          _
        $region44: #{tpu_custom_call.1} parent=11 // pred_fallthru
          _
        // Predicated region
        $region45: #{tpu_custom_call.1} parent=11 // pred_check
          %p302 = pneg %p237
        $region46: #{tpu_custom_call.1} parent=11 // pred_check_branch
          %304 = sbr.rel (%p302) target = $region48
        $region47: #{tpu_custom_call.1} parent=11 // pred_region
          _
        $region48: #{tpu_custom_call.1} parent=11 // pred_fallthru
          _
      $region12: #{tpu_custom_call.1} parent=5 // pred_fallthru
        _
      %p305 = scmp.lt.s32.totalorder %s22, 2
      // Predicated region
      $region49: #{tpu_custom_call.1} parent=5 // pred_check
        %p306 = pneg %p305
      $region50: #{tpu_custom_call.1} parent=5 // pred_check_branch
        %308 = sbr.rel (%p306) target = $region52
      $region51: #{tpu_custom_call.1} parent=5 // pred_region
        // Predicated region
        $region53: #{tpu_custom_call.1} parent=51 // pred_check
          %p309 = pneg %p42
        $region54: #{tpu_custom_call.1} parent=51 // pred_check_branch
          %311 = sbr.rel (%p309) target = $region56
        $region55: #{tpu_custom_call.1} parent=51 // pred_region
          %s312 = sand.u32 %s32, 1
          %s313 = scalar_lea.sflag [#allocation4], %s312
          %s314 = sand.u32 %s32, 1
          %s315 = smul.addr %s314, 256
          %s316 = scalar_lea.vmem [#allocation3], %s315
          %318 = vsyncadd %s313, 0
          %s319 = smul.addr %s22, 32
          %s320 = smul.addr %s319, 8
          %s321 = scalar_lea.hbm %s0, %s320
          %s322 = sshll.u32 %s321, 4
          %s323 = int_to_ptr.hbm [resolvable:$true] %s322
          %s324 = sshll.u32 %s316, 4
          %s325 = int_to_ptr.vmem [resolvable:$true] %s324
          %330 = dma.hbm_to_vmem [thread:$0]  %s323, 4096, %s325, %s313, 128, 128, 8
        $region56: #{tpu_custom_call.1} parent=51 // pred_fallthru
          _
      $region52: #{tpu_custom_call.1} parent=5 // pred_fallthru
        _
      %p331 = scmp.le.s32.totalorder 1, %s22
      %p332 = scmp.lt.s32.totalorder %s22, 3
      %p333 = pnand %p331, %p332
      %p334 = pneg %p333
      // Predicated region
      $region57: #{tpu_custom_call.1} parent=5 // pred_check
        _
      $region58: #{tpu_custom_call.1} parent=5 // pred_check_branch
        %336 = sbr.rel (%p333) target = $region60
      $region59: #{tpu_custom_call.1} parent=5 // pred_region
        %s337 = ssub.s32 %s22, 1
        %s338 = sand.u32 %s35, 1
        %s339 = scalar_lea.sflag [#allocation4], %s338
        %s340 = sand.u32 %s35, 1
        %s341 = smul.addr %s340, 256
        %s342 = scalar_lea.vmem [#allocation3], %s341
        // Predicated region
        $region61: #{tpu_custom_call.1} parent=59 // pred_check
          %p343 = pneg %p48
        $region62: #{tpu_custom_call.1} parent=59 // pred_check_branch
          %345 = sbr.rel (%p343) target = $region64
        $region63: #{tpu_custom_call.1} parent=59 // pred_region
          %347 = dma.done %s339, 4096
        $region64: #{tpu_custom_call.1} parent=59 // pred_fallthru
          _
        %s348 = sand.u32 %s35, 1
        %s349 = scalar_lea.sflag [#allocation4], %s348
        %s350 = sand.u32 %s35, 1
        %s351 = smul.addr %s350, 256
        %s352 = scalar_lea.vmem [#allocation3], %s351
        %p353 = pneg %p48
        %p354 = pneg %p45
        %p355 = pneg %p69
        %p356 = pneg %p66
        %p357 = pneg %p90
        %p358 = pneg %p87
        %p359 = pneg %p111
        %p360 = pneg %p108
        %p361 = pneg %p132
        %p362 = pneg %p129
        %p363 = pneg %p153
        %p364 = pneg %p150
        %p365 = pneg %p174
        %p366 = pneg %p171
        %p367 = pneg %p195
        %p368 = pneg %p192
        %p369 = pneg %p216
        %p370 = pneg %p213
        %p371 = pneg %p237
        %p372 = pneg %p234
        %p373 = pneg %p263
        %p374 = pneg %p260
        %s375 = sand.u32 %s250, 1
        %s376 = scalar_lea.sflag [#allocation5], %s375
        %s377 = sand.u32 %s250, 1
        %s378 = smul.addr %s377, 256
        %s379 = scalar_lea.vmem [#allocation6], %s378
        %v380 = vld [vmem:[%s342] sm:$0xff]
        %v381 = vld [vmem:[%s342 + $0x8] sm:$0xff]
        %v382 = vld [vmem:[%s342 + $0x10] sm:$0xff]
        %v383 = vld [vmem:[%s342 + $0x18] sm:$0xff]
        %v384 = vld [vmem:[%s342 + $0x20] sm:$0xff]
        %v385 = vld [vmem:[%s342 + $0x28] sm:$0xff]
        %v386 = vld [vmem:[%s342 + $0x30] sm:$0xff]
        %v387 = vld [vmem:[%s342 + $0x38] sm:$0xff]
        %v388 = vld [vmem:[%s342 + $0x40] sm:$0xff]
        %v389 = vld [vmem:[%s342 + $0x48] sm:$0xff]
        %v390 = vld [vmem:[%s342 + $0x50] sm:$0xff]
        %v391 = vld [vmem:[%s342 + $0x58] sm:$0xff]
        %v392 = vld [vmem:[%s342 + $0x60] sm:$0xff]
        %v393 = vld [vmem:[%s342 + $0x68] sm:$0xff]
        %v394 = vld [vmem:[%s342 + $0x70] sm:$0xff]
        %v395 = vld [vmem:[%s342 + $0x78] sm:$0xff]
        %v396 = vld [vmem:[%s342 + $0x80] sm:$0xff]
        %v397 = vld [vmem:[%s342 + $0x88] sm:$0xff]
        %v398 = vld [vmem:[%s342 + $0x90] sm:$0xff]
        %v399 = vld [vmem:[%s342 + $0x98] sm:$0xff]
        %v400 = vld [vmem:[%s342 + $0xa0] sm:$0xff]
        %v401 = vld [vmem:[%s342 + $0xa8] sm:$0xff]
        %v402 = vld [vmem:[%s342 + $0xb0] sm:$0xff]
        %v403 = vld [vmem:[%s342 + $0xb8] sm:$0xff]
        %v404 = vld [vmem:[%s342 + $0xc0] sm:$0xff]
        %v405 = vld [vmem:[%s342 + $0xc8] sm:$0xff]
        %v406 = vld [vmem:[%s342 + $0xd0] sm:$0xff]
        %v407 = vld [vmem:[%s342 + $0xd8] sm:$0xff]
        %v408 = vld [vmem:[%s342 + $0xe0] sm:$0xff]
        %v409 = vld [vmem:[%s342 + $0xe8] sm:$0xff]
        %v410 = vld [vmem:[%s342 + $0xf0] sm:$0xff]
        %v411 = vld [vmem:[%s342 + $0xf8] sm:$0xff]
        %v412 = vld [vmem:[%s1] sm:$0xff]
        %v413 = vld [vmem:[%s1 + $0x8] sm:$0xff]
        %v414 = vld [vmem:[%s1 + $0x10] sm:$0xff]
        %v415 = vld [vmem:[%s1 + $0x18] sm:$0xff]
        %v416 = vld [vmem:[%s1 + $0x20] sm:$0xff]
        %v417 = vld [vmem:[%s1 + $0x28] sm:$0xff]
        %v418 = vld [vmem:[%s1 + $0x30] sm:$0xff]
        %v419 = vld [vmem:[%s1 + $0x38] sm:$0xff]
        %vm420 = vcmask 523264
        %v422 = vsel %vm420, %v380, 0
        %v425 = vsel %vm420, %v381, 0
        %v428 = vsel %vm420, %v382, 0
        %v431 = vsel %vm420, %v383, 0
        %v434 = vsel %vm420, %v384, 0
        %v437 = vsel %vm420, %v385, 0
        %v440 = vsel %vm420, %v386, 0
        %v443 = vsel %vm420, %v387, 0
        %v446 = vsel %vm420, %v388, 0
        %v449 = vsel %vm420, %v389, 0
        %v452 = vsel %vm420, %v390, 0
        %v455 = vsel %vm420, %v391, 0
        %v458 = vsel %vm420, %v392, 0
        %v461 = vsel %vm420, %v393, 0
        %v464 = vsel %vm420, %v394, 0
        %v467 = vsel %vm420, %v395, 0
        %v470 = vsel %vm420, %v396, 0
        %v473 = vsel %vm420, %v397, 0
        %v476 = vsel %vm420, %v398, 0
        %v479 = vsel %vm420, %v399, 0
        %v482 = vsel %vm420, %v400, 0
        %v485 = vsel %vm420, %v401, 0
        %v488 = vsel %vm420, %v402, 0
        %v491 = vsel %vm420, %v403, 0
        %v494 = vsel %vm420, %v404, 0
        %v497 = vsel %vm420, %v405, 0
        %v500 = vsel %vm420, %v406, 0
        %v503 = vsel %vm420, %v407, 0
        %v506 = vsel %vm420, %v408, 0
        %v509 = vsel %vm420, %v409, 0
        %v512 = vsel %vm420, %v410, 0
        %v515 = vsel %vm420, %v411, 0
        %517 = vmatpush.msra.mxu0 0.0
        %518 = vmatpush.msra.mxu0 0.0
        %519 = vmatpush.msra.mxu0 0.0
        %520 = vmatpush.msra.mxu0 0.0
        %521 = vmatpush.msra.mxu0 0.0
        %522 = vmatpush.msra.mxu0 0.0
        %523 = vmatpush.msra.mxu0 0.0
        %524 = vmatpush.msra.mxu0 0.0
        %525 = vmatpush.msra.mxu0 %v419
        %526 = vmatpush.msra.mxu0 %v418
        %527 = vmatpush.msra.mxu0 %v417
        %528 = vmatpush.msra.mxu0 %v416
        %529 = vmatpush.msra.mxu0 %v415
        %530 = vmatpush.msra.mxu0 %v414
        %531 = vmatpush.msra.mxu0 %v413
        %532 = vmatpush.msra.mxu0 %v412
        %533 = vmatmul.f32.gmra.mxu0 %v422
        %v534 = vpop.f32.mrf.mxu0
        %v535 = vadd.f32 0.0, %v534
        %536 = vmatmul.f32.gmra.mxu0 %v425
        %v537 = vpop.f32.mrf.mxu0
        %v538 = vadd.f32 0.0, %v537
        %539 = vmatmul.f32.gmra.mxu0 %v428
        %v540 = vpop.f32.mrf.mxu0
        %v541 = vadd.f32 0.0, %v540
        %542 = vmatmul.f32.gmra.mxu0 %v431
        %v543 = vpop.f32.mrf.mxu0
        %v544 = vadd.f32 0.0, %v543
        %545 = vmatmul.f32.gmra.mxu0 %v434
        %v546 = vpop.f32.mrf.mxu0
        %v547 = vadd.f32 0.0, %v546
        %548 = vmatmul.f32.gmra.mxu0 %v437
        %v549 = vpop.f32.mrf.mxu0
        %v550 = vadd.f32 0.0, %v549
        %551 = vmatmul.f32.gmra.mxu0 %v440
        %v552 = vpop.f32.mrf.mxu0
        %v553 = vadd.f32 0.0, %v552
        %554 = vmatmul.f32.gmra.mxu0 %v443
        %v555 = vpop.f32.mrf.mxu0
        %v556 = vadd.f32 0.0, %v555
        %557 = vmatmul.f32.gmra.mxu0 %v446
        %v558 = vpop.f32.mrf.mxu0
        %v559 = vadd.f32 0.0, %v558
        %560 = vmatmul.f32.gmra.mxu0 %v449
        %v561 = vpop.f32.mrf.mxu0
        %v562 = vadd.f32 0.0, %v561
        %563 = vmatmul.f32.gmra.mxu0 %v452
        %v564 = vpop.f32.mrf.mxu0
        %v565 = vadd.f32 0.0, %v564
        %566 = vmatmul.f32.gmra.mxu0 %v455
        %v567 = vpop.f32.mrf.mxu0
        %v568 = vadd.f32 0.0, %v567
        %569 = vmatmul.f32.gmra.mxu0 %v458
        %v570 = vpop.f32.mrf.mxu0
        %v571 = vadd.f32 0.0, %v570
        %572 = vmatmul.f32.gmra.mxu0 %v461
        %v573 = vpop.f32.mrf.mxu0
        %v574 = vadd.f32 0.0, %v573
        %575 = vmatmul.f32.gmra.mxu0 %v464
        %v576 = vpop.f32.mrf.mxu0
        %v577 = vadd.f32 0.0, %v576
        %578 = vmatmul.f32.gmra.mxu0 %v467
        %v579 = vpop.f32.mrf.mxu0
        %v580 = vadd.f32 0.0, %v579
        %581 = vmatmul.f32.gmra.mxu0 %v470
        %v582 = vpop.f32.mrf.mxu0
        %v583 = vadd.f32 0.0, %v582
        %584 = vmatmul.f32.gmra.mxu0 %v473
        %v585 = vpop.f32.mrf.mxu0
        %v586 = vadd.f32 0.0, %v585
        %587 = vmatmul.f32.gmra.mxu0 %v476
        %v588 = vpop.f32.mrf.mxu0
        %v589 = vadd.f32 0.0, %v588
        %590 = vmatmul.f32.gmra.mxu0 %v479
        %v591 = vpop.f32.mrf.mxu0
        %v592 = vadd.f32 0.0, %v591
        %593 = vmatmul.f32.gmra.mxu0 %v482
        %v594 = vpop.f32.mrf.mxu0
        %v595 = vadd.f32 0.0, %v594
        %596 = vmatmul.f32.gmra.mxu0 %v485
        %v597 = vpop.f32.mrf.mxu0
        %v598 = vadd.f32 0.0, %v597
        %599 = vmatmul.f32.gmra.mxu0 %v488
        %v600 = vpop.f32.mrf.mxu0
        %v601 = vadd.f32 0.0, %v600
        %602 = vmatmul.f32.gmra.mxu0 %v491
        %v603 = vpop.f32.mrf.mxu0
        %v604 = vadd.f32 0.0, %v603
        %605 = vmatmul.f32.gmra.mxu0 %v494
        %v606 = vpop.f32.mrf.mxu0
        %v607 = vadd.f32 0.0, %v606
        %608 = vmatmul.f32.gmra.mxu0 %v497
        %v609 = vpop.f32.mrf.mxu0
        %v610 = vadd.f32 0.0, %v609
        %611 = vmatmul.f32.gmra.mxu0 %v500
        %v612 = vpop.f32.mrf.mxu0
        %v613 = vadd.f32 0.0, %v612
        %614 = vmatmul.f32.gmra.mxu0 %v503
        %v615 = vpop.f32.mrf.mxu0
        %v616 = vadd.f32 0.0, %v615
        %617 = vmatmul.f32.gmra.mxu0 %v506
        %v618 = vpop.f32.mrf.mxu0
        %v619 = vadd.f32 0.0, %v618
        %620 = vmatmul.f32.gmra.mxu0 %v509
        %v621 = vpop.f32.mrf.mxu0
        %v622 = vadd.f32 0.0, %v621
        %623 = vmatmul.f32.gmra.mxu0 %v512
        %v624 = vpop.f32.mrf.mxu0
        %v625 = vadd.f32 0.0, %v624
        %626 = vmatmul.f32.gmra.mxu0 %v515
        %v627 = vpop.f32.mrf.mxu0
        %v628 = vadd.f32 0.0, %v627
        %629 = vdwg.mxu0
        %v630 = vld [vmem:[%s2] sm:$0x1]
        %v632 = vperm.slane %v630, 0
        %v634 = vmul.f32 %v535, %v632
        %v635 = vmul.f32 %v538, %v632
        %v636 = vmul.f32 %v541, %v632
        %v637 = vmul.f32 %v544, %v632
        %v638 = vmul.f32 %v547, %v632
        %v639 = vmul.f32 %v550, %v632
        %v640 = vmul.f32 %v553, %v632
        %v641 = vmul.f32 %v556, %v632
        %v642 = vmul.f32 %v559, %v632
        %v643 = vmul.f32 %v562, %v632
        %v644 = vmul.f32 %v565, %v632
        %v645 = vmul.f32 %v568, %v632
        %v646 = vmul.f32 %v571, %v632
        %v647 = vmul.f32 %v574, %v632
        %v648 = vmul.f32 %v577, %v632
        %v649 = vmul.f32 %v580, %v632
        %v650 = vmul.f32 %v583, %v632
        %v651 = vmul.f32 %v586, %v632
        %v652 = vmul.f32 %v589, %v632
        %v653 = vmul.f32 %v592, %v632
        %v654 = vmul.f32 %v595, %v632
        %v655 = vmul.f32 %v598, %v632
        %v656 = vmul.f32 %v601, %v632
        %v657 = vmul.f32 %v604, %v632
        %v658 = vmul.f32 %v607, %v632
        %v659 = vmul.f32 %v610, %v632
        %v660 = vmul.f32 %v613, %v632
        %v661 = vmul.f32 %v616, %v632
        %v662 = vmul.f32 %v619, %v632
        %v663 = vmul.f32 %v622, %v632
        %v664 = vmul.f32 %v625, %v632
        %v665 = vmul.f32 %v628, %v632
        %v666 = vld [vmem:[%s3] sm:$0x1]
        %v668 = vperm.slane %v666, 0
        %v670 = vadd.f32 %v634, %v668
        %v671 = vadd.f32 %v635, %v668
        %v672 = vadd.f32 %v636, %v668
        %v673 = vadd.f32 %v637, %v668
        %v674 = vadd.f32 %v638, %v668
        %v675 = vadd.f32 %v639, %v668
        %v676 = vadd.f32 %v640, %v668
        %v677 = vadd.f32 %v641, %v668
        %v678 = vadd.f32 %v642, %v668
        %v679 = vadd.f32 %v643, %v668
        %v680 = vadd.f32 %v644, %v668
        %v681 = vadd.f32 %v645, %v668
        %v682 = vadd.f32 %v646, %v668
        %v683 = vadd.f32 %v647, %v668
        %v684 = vadd.f32 %v648, %v668
        %v685 = vadd.f32 %v649, %v668
        %v686 = vadd.f32 %v650, %v668
        %v687 = vadd.f32 %v651, %v668
        %v688 = vadd.f32 %v652, %v668
        %v689 = vadd.f32 %v653, %v668
        %v690 = vadd.f32 %v654, %v668
        %v691 = vadd.f32 %v655, %v668
        %v692 = vadd.f32 %v656, %v668
        %v693 = vadd.f32 %v657, %v668
        %v694 = vadd.f32 %v658, %v668
        %v695 = vadd.f32 %v659, %v668
        %v696 = vadd.f32 %v660, %v668
        %v697 = vadd.f32 %v661, %v668
        %v698 = vadd.f32 %v662, %v668
        %v699 = vadd.f32 %v663, %v668
        %v700 = vadd.f32 %v664, %v668
        %v701 = vadd.f32 %v665, %v668
        %v702 = vmax.f32 %v670, 0.0
        %v703 = vmax.f32 %v671, 0.0
        %v704 = vmax.f32 %v672, 0.0
        %v705 = vmax.f32 %v673, 0.0
        %v706 = vmax.f32 %v674, 0.0
        %v707 = vmax.f32 %v675, 0.0
        %v708 = vmax.f32 %v676, 0.0
        %v709 = vmax.f32 %v677, 0.0
        %v710 = vmax.f32 %v678, 0.0
        %v711 = vmax.f32 %v679, 0.0
        %v712 = vmax.f32 %v680, 0.0
        %v713 = vmax.f32 %v681, 0.0
        %v714 = vmax.f32 %v682, 0.0
        %v715 = vmax.f32 %v683, 0.0
        %v716 = vmax.f32 %v684, 0.0
        %v717 = vmax.f32 %v685, 0.0
        %v718 = vmax.f32 %v686, 0.0
        %v719 = vmax.f32 %v687, 0.0
        %v720 = vmax.f32 %v688, 0.0
        %v721 = vmax.f32 %v689, 0.0
        %v722 = vmax.f32 %v690, 0.0
        %v723 = vmax.f32 %v691, 0.0
        %v724 = vmax.f32 %v692, 0.0
        %v725 = vmax.f32 %v693, 0.0
        %v726 = vmax.f32 %v694, 0.0
        %v727 = vmax.f32 %v695, 0.0
        %v728 = vmax.f32 %v696, 0.0
        %v729 = vmax.f32 %v697, 0.0
        %v730 = vmax.f32 %v698, 0.0
        %v731 = vmax.f32 %v699, 0.0
        %v732 = vmax.f32 %v700, 0.0
        %v733 = vmax.f32 %v701, 0.0
        %v734 = vrot.slane %v702, 7
        %v735 = vrot.slane %v703, 7
        %v736 = vrot.slane %v704, 7
        %v737 = vrot.slane %v705, 7
        %v738 = vrot.slane %v706, 7
        %v739 = vrot.slane %v707, 7
        %v740 = vrot.slane %v708, 7
        %v741 = vrot.slane %v709, 7
        %v742 = vrot.slane %v710, 7
        %v743 = vrot.slane %v711, 7
        %v744 = vrot.slane %v712, 7
        %v745 = vrot.slane %v713, 7
        %v746 = vrot.slane %v714, 7
        %v747 = vrot.slane %v715, 7
        %v748 = vrot.slane %v716, 7
        %v749 = vrot.slane %v717, 7
        %v750 = vrot.slane %v718, 7
        %v751 = vrot.slane %v719, 7
        %v752 = vrot.slane %v720, 7
        %v753 = vrot.slane %v721, 7
        %v754 = vrot.slane %v722, 7
        %v755 = vrot.slane %v723, 7
        %v756 = vrot.slane %v724, 7
        %v757 = vrot.slane %v725, 7
        %v758 = vrot.slane %v726, 7
        %v759 = vrot.slane %v727, 7
        %v760 = vrot.slane %v728, 7
        %v761 = vrot.slane %v729, 7
        %v762 = vrot.slane %v730, 7
        %v763 = vrot.slane %v731, 7
        %v764 = vrot.slane %v732, 7
        %v765 = vrot.slane %v733, 7
        %v766 = vlaneseq
        %v767 = vshrl.u32 %v766, 7
        %vm768 = vcmp.lt.s32.totalorder %v767, 1
        %v769 = vsel %vm768, %v764, %v765
        %v770 = vsel %vm768, %v763, %v764
        %v771 = vsel %vm768, %v762, %v763
        %v772 = vsel %vm768, %v761, %v762
        %v773 = vsel %vm768, %v760, %v761
        %v774 = vsel %vm768, %v759, %v760
        %v775 = vsel %vm768, %v758, %v759
        %v776 = vsel %vm768, %v757, %v758
        %v777 = vsel %vm768, %v756, %v757
        %v778 = vsel %vm768, %v755, %v756
        %v779 = vsel %vm768, %v754, %v755
        %v780 = vsel %vm768, %v753, %v754
        %v781 = vsel %vm768, %v752, %v753
        %v782 = vsel %vm768, %v751, %v752
        %v783 = vsel %vm768, %v750, %v751
        %v784 = vsel %vm768, %v749, %v750
        %v785 = vsel %vm768, %v748, %v749
        %v786 = vsel %vm768, %v747, %v748
        %v787 = vsel %vm768, %v746, %v747
        %v788 = vsel %vm768, %v745, %v746
        %v789 = vsel %vm768, %v744, %v745
        %v790 = vsel %vm768, %v743, %v744
        %v791 = vsel %vm768, %v742, %v743
        %v792 = vsel %vm768, %v741, %v742
        %v793 = vsel %vm768, %v740, %v741
        %v794 = vsel %vm768, %v739, %v740
        %v795 = vsel %vm768, %v738, %v739
        %v796 = vsel %vm768, %v737, %v738
        %v797 = vsel %vm768, %v736, %v737
        %v798 = vsel %vm768, %v735, %v736
        %v799 = vsel %vm768, %v734, %v735
        %v800 = vsel %vm768, %v765, %v734
        %v801 = vrot.slane %v702, 1
        %v802 = vrot.slane %v703, 1
        %v803 = vrot.slane %v704, 1
        %v804 = vrot.slane %v705, 1
        %v805 = vrot.slane %v706, 1
        %v806 = vrot.slane %v707, 1
        %v807 = vrot.slane %v708, 1
        %v808 = vrot.slane %v709, 1
        %v809 = vrot.slane %v710, 1
        %v810 = vrot.slane %v711, 1
        %v811 = vrot.slane %v712, 1
        %v812 = vrot.slane %v713, 1
        %v813 = vrot.slane %v714, 1
        %v814 = vrot.slane %v715, 1
        %v815 = vrot.slane %v716, 1
        %v816 = vrot.slane %v717, 1
        %v817 = vrot.slane %v718, 1
        %v818 = vrot.slane %v719, 1
        %v819 = vrot.slane %v720, 1
        %v820 = vrot.slane %v721, 1
        %v821 = vrot.slane %v722, 1
        %v822 = vrot.slane %v723, 1
        %v823 = vrot.slane %v724, 1
        %v824 = vrot.slane %v725, 1
        %v825 = vrot.slane %v726, 1
        %v826 = vrot.slane %v727, 1
        %v827 = vrot.slane %v728, 1
        %v828 = vrot.slane %v729, 1
        %v829 = vrot.slane %v730, 1
        %v830 = vrot.slane %v731, 1
        %v831 = vrot.slane %v732, 1
        %v832 = vrot.slane %v733, 1
        %vm833 = vcmp.lt.s32.totalorder %v767, 7
        %v834 = vsel %vm833, %v831, %v832
        %v835 = vsel %vm833, %v830, %v831
        %v836 = vsel %vm833, %v829, %v830
        %v837 = vsel %vm833, %v828, %v829
        %v838 = vsel %vm833, %v827, %v828
        %v839 = vsel %vm833, %v826, %v827
        %v840 = vsel %vm833, %v825, %v826
        %v841 = vsel %vm833, %v824, %v825
        %v842 = vsel %vm833, %v823, %v824
        %v843 = vsel %vm833, %v822, %v823
        %v844 = vsel %vm833, %v821, %v822
        %v845 = vsel %vm833, %v820, %v821
        %v846 = vsel %vm833, %v819, %v820
        %v847 = vsel %vm833, %v818, %v819
        %v848 = vsel %vm833, %v817, %v818
        %v849 = vsel %vm833, %v816, %v817
        %v850 = vsel %vm833, %v815, %v816
        %v851 = vsel %vm833, %v814, %v815
        %v852 = vsel %vm833, %v813, %v814
        %v853 = vsel %vm833, %v812, %v813
        %v854 = vsel %vm833, %v811, %v812
        %v855 = vsel %vm833, %v810, %v811
        %v856 = vsel %vm833, %v809, %v810
        %v857 = vsel %vm833, %v808, %v809
        %v858 = vsel %vm833, %v807, %v808
        %v859 = vsel %vm833, %v806, %v807
        %v860 = vsel %vm833, %v805, %v806
        %v861 = vsel %vm833, %v804, %v805
        %v862 = vsel %vm833, %v803, %v804
        %v863 = vsel %vm833, %v802, %v803
        %v864 = vsel %vm833, %v801, %v802
        %v865 = vsel %vm833, %v832, %v801
        %v866 = vadd.s32 %v767, 8
        %vm867 = vcmp.eq.s32.totalorder %v767, 0
        %vm868 = vcmp.eq.s32.totalorder %v866, 0
        %v869 = vsel %vm867, 0.0, %v800
        %v870 = vsel %vm868, 0.0, %v799
        %v871 = vsel %vm867, 0.0, %v798
        %v872 = vsel %vm868, 0.0, %v797
        %v873 = vsel %vm867, 0.0, %v796
        %v874 = vsel %vm868, 0.0, %v795
        %v875 = vsel %vm867, 0.0, %v794
        %v876 = vsel %vm868, 0.0, %v793
        %v877 = vsel %vm867, 0.0, %v792
        %v878 = vsel %vm868, 0.0, %v791
        %v879 = vsel %vm867, 0.0, %v790
        %v880 = vsel %vm868, 0.0, %v789
        %v881 = vsel %vm867, 0.0, %v788
        %v882 = vsel %vm868, 0.0, %v787
        %v883 = vsel %vm867, 0.0, %v786
        %v884 = vsel %vm868, 0.0, %v785
        %v885 = vsel %vm867, 0.0, %v784
        %v886 = vsel %vm868, 0.0, %v783
        %v887 = vsel %vm867, 0.0, %v782
        %v888 = vsel %vm868, 0.0, %v781
        %v889 = vsel %vm867, 0.0, %v780
        %v890 = vsel %vm868, 0.0, %v779
        %v891 = vsel %vm867, 0.0, %v778
        %v892 = vsel %vm868, 0.0, %v777
        %v893 = vsel %vm867, 0.0, %v776
        %v894 = vsel %vm868, 0.0, %v775
        %v895 = vsel %vm867, 0.0, %v774
        %v896 = vsel %vm868, 0.0, %v773
        %v897 = vsel %vm867, 0.0, %v772
        %v898 = vsel %vm868, 0.0, %v771
        %v899 = vsel %vm867, 0.0, %v770
        %v900 = vsel %vm868, 0.0, %v769
        %vm901 = vcmp.eq.s32.totalorder %v767, 15
        %vm902 = vcmp.eq.s32.totalorder %v866, 15
        %v903 = vsel %vm901, 0.0, %v864
        %v904 = vsel %vm902, 0.0, %v863
        %v905 = vsel %vm901, 0.0, %v862
        %v906 = vsel %vm902, 0.0, %v861
        %v907 = vsel %vm901, 0.0, %v860
        %v908 = vsel %vm902, 0.0, %v859
        %v909 = vsel %vm901, 0.0, %v858
        %v910 = vsel %vm902, 0.0, %v857
        %v911 = vsel %vm901, 0.0, %v856
        %v912 = vsel %vm902, 0.0, %v855
        %v913 = vsel %vm901, 0.0, %v854
        %v914 = vsel %vm902, 0.0, %v853
        %v915 = vsel %vm901, 0.0, %v852
        %v916 = vsel %vm902, 0.0, %v851
        %v917 = vsel %vm901, 0.0, %v850
        %v918 = vsel %vm902, 0.0, %v849
        %v919 = vsel %vm901, 0.0, %v848
        %v920 = vsel %vm902, 0.0, %v847
        %v921 = vsel %vm901, 0.0, %v846
        %v922 = vsel %vm902, 0.0, %v845
        %v923 = vsel %vm901, 0.0, %v844
        %v924 = vsel %vm902, 0.0, %v843
        %v925 = vsel %vm901, 0.0, %v842
        %v926 = vsel %vm902, 0.0, %v841
        %v927 = vsel %vm901, 0.0, %v840
        %v928 = vsel %vm902, 0.0, %v839
        %v929 = vsel %vm901, 0.0, %v838
        %v930 = vsel %vm902, 0.0, %v837
        %v931 = vsel %vm901, 0.0, %v836
        %v932 = vsel %vm902, 0.0, %v835
        %v933 = vsel %vm901, 0.0, %v834
        %v934 = vsel %vm902, 0.0, %v865
        %967 = vrot.lane.b32.xlu0 %v702, 16
        %v968 = vpop.permute.xlu0 %967
        %969 = vrot.lane.b32.xlu0 %v703, 16
        %v970 = vpop.permute.xlu0 %969
        %971 = vrot.lane.b32.xlu0 %v704, 16
        %v972 = vpop.permute.xlu0 %971
        %973 = vrot.lane.b32.xlu0 %v705, 16
        %v974 = vpop.permute.xlu0 %973
        %975 = vrot.lane.b32.xlu0 %v706, 16
        %v976 = vpop.permute.xlu0 %975
        %977 = vrot.lane.b32.xlu0 %v707, 16
        %v978 = vpop.permute.xlu0 %977
        %979 = vrot.lane.b32.xlu0 %v708, 16
        %v980 = vpop.permute.xlu0 %979
        %981 = vrot.lane.b32.xlu0 %v709, 16
        %v982 = vpop.permute.xlu0 %981
        %983 = vrot.lane.b32.xlu0 %v710, 16
        %v984 = vpop.permute.xlu0 %983
        %985 = vrot.lane.b32.xlu0 %v711, 16
        %v986 = vpop.permute.xlu0 %985
        %987 = vrot.lane.b32.xlu0 %v712, 16
        %v988 = vpop.permute.xlu0 %987
        %989 = vrot.lane.b32.xlu0 %v713, 16
        %v990 = vpop.permute.xlu0 %989
        %991 = vrot.lane.b32.xlu0 %v714, 16
        %v992 = vpop.permute.xlu0 %991
        %993 = vrot.lane.b32.xlu0 %v715, 16
        %v994 = vpop.permute.xlu0 %993
        %995 = vrot.lane.b32.xlu0 %v716, 16
        %v996 = vpop.permute.xlu0 %995
        %997 = vrot.lane.b32.xlu0 %v717, 16
        %v998 = vpop.permute.xlu0 %997
        %999 = vrot.lane.b32.xlu0 %v718, 16
        %v1000 = vpop.permute.xlu0 %999
        %1001 = vrot.lane.b32.xlu0 %v719, 16
        %v1002 = vpop.permute.xlu0 %1001
        %1003 = vrot.lane.b32.xlu0 %v720, 16
        %v1004 = vpop.permute.xlu0 %1003
        %1005 = vrot.lane.b32.xlu0 %v721, 16
        %v1006 = vpop.permute.xlu0 %1005
        %1007 = vrot.lane.b32.xlu0 %v722, 16
        %v1008 = vpop.permute.xlu0 %1007
        %1009 = vrot.lane.b32.xlu0 %v723, 16
        %v1010 = vpop.permute.xlu0 %1009
        %1011 = vrot.lane.b32.xlu0 %v724, 16
        %v1012 = vpop.permute.xlu0 %1011
        %1013 = vrot.lane.b32.xlu0 %v725, 16
        %v1014 = vpop.permute.xlu0 %1013
        %1015 = vrot.lane.b32.xlu0 %v726, 16
        %v1016 = vpop.permute.xlu0 %1015
        %1017 = vrot.lane.b32.xlu0 %v727, 16
        %v1018 = vpop.permute.xlu0 %1017
        %1019 = vrot.lane.b32.xlu0 %v728, 16
        %v1020 = vpop.permute.xlu0 %1019
        %1021 = vrot.lane.b32.xlu0 %v729, 16
        %v1022 = vpop.permute.xlu0 %1021
        %1023 = vrot.lane.b32.xlu0 %v730, 16
        %v1024 = vpop.permute.xlu0 %1023
        %1025 = vrot.lane.b32.xlu0 %v731, 16
        %v1026 = vpop.permute.xlu0 %1025
        %1027 = vrot.lane.b32.xlu0 %v732, 16
        %v1028 = vpop.permute.xlu0 %1027
        %1029 = vrot.lane.b32.xlu0 %v733, 16
        %v1030 = vpop.permute.xlu0 %1029
        %1095 = vrot.lane.b32.xlu0 %v903, 32
        %v1096 = vpop.permute.xlu0 %1095
        %1097 = vrot.lane.b32.xlu0 %v904, 32
        %v1098 = vpop.permute.xlu0 %1097
        %1099 = vrot.lane.b32.xlu0 %v905, 32
        %v1100 = vpop.permute.xlu0 %1099
        %1101 = vrot.lane.b32.xlu0 %v906, 32
        %v1102 = vpop.permute.xlu0 %1101
        %1103 = vrot.lane.b32.xlu0 %v907, 32
        %v1104 = vpop.permute.xlu0 %1103
        %1105 = vrot.lane.b32.xlu0 %v908, 32
        %v1106 = vpop.permute.xlu0 %1105
        %1107 = vrot.lane.b32.xlu0 %v909, 32
        %v1108 = vpop.permute.xlu0 %1107
        %1109 = vrot.lane.b32.xlu0 %v910, 32
        %v1110 = vpop.permute.xlu0 %1109
        %1111 = vrot.lane.b32.xlu0 %v911, 32
        %v1112 = vpop.permute.xlu0 %1111
        %1113 = vrot.lane.b32.xlu0 %v912, 32
        %v1114 = vpop.permute.xlu0 %1113
        %1115 = vrot.lane.b32.xlu0 %v913, 32
        %v1116 = vpop.permute.xlu0 %1115
        %1117 = vrot.lane.b32.xlu0 %v914, 32
        %v1118 = vpop.permute.xlu0 %1117
        %1119 = vrot.lane.b32.xlu0 %v915, 32
        %v1120 = vpop.permute.xlu0 %1119
        %1121 = vrot.lane.b32.xlu0 %v916, 32
        %v1122 = vpop.permute.xlu0 %1121
        %1123 = vrot.lane.b32.xlu0 %v917, 32
        %v1124 = vpop.permute.xlu0 %1123
        %1125 = vrot.lane.b32.xlu0 %v918, 32
        %v1126 = vpop.permute.xlu0 %1125
        %1127 = vrot.lane.b32.xlu0 %v919, 32
        %v1128 = vpop.permute.xlu0 %1127
        %1129 = vrot.lane.b32.xlu0 %v920, 32
        %v1130 = vpop.permute.xlu0 %1129
        %1131 = vrot.lane.b32.xlu0 %v921, 32
        %v1132 = vpop.permute.xlu0 %1131
        %1133 = vrot.lane.b32.xlu0 %v922, 32
        %v1134 = vpop.permute.xlu0 %1133
        %1135 = vrot.lane.b32.xlu0 %v923, 32
        %v1136 = vpop.permute.xlu0 %1135
        %1137 = vrot.lane.b32.xlu0 %v924, 32
        %v1138 = vpop.permute.xlu0 %1137
        %1139 = vrot.lane.b32.xlu0 %v925, 32
        %v1140 = vpop.permute.xlu0 %1139
        %1141 = vrot.lane.b32.xlu0 %v926, 32
        %v1142 = vpop.permute.xlu0 %1141
        %1143 = vrot.lane.b32.xlu0 %v927, 32
        %v1144 = vpop.permute.xlu0 %1143
        %1145 = vrot.lane.b32.xlu0 %v928, 32
        %v1146 = vpop.permute.xlu0 %1145
        %1147 = vrot.lane.b32.xlu0 %v929, 32
        %v1148 = vpop.permute.xlu0 %1147
        %1149 = vrot.lane.b32.xlu0 %v930, 32
        %v1150 = vpop.permute.xlu0 %1149
        %1151 = vrot.lane.b32.xlu0 %v931, 32
        %v1152 = vpop.permute.xlu0 %1151
        %1153 = vrot.lane.b32.xlu0 %v932, 32
        %v1154 = vpop.permute.xlu0 %1153
        %1155 = vrot.lane.b32.xlu0 %v933, 32
        %v1156 = vpop.permute.xlu0 %1155
        %1157 = vrot.lane.b32.xlu0 %v934, 32
        %v1158 = vpop.permute.xlu0 %1157
        %vm1191 = vcmask 130048
        %v1192 = vsel %vm1191, %v869, %v968
        %v1193 = vsel %vm1191, %v870, %v970
        %v1194 = vsel %vm1191, %v871, %v972
        %v1195 = vsel %vm1191, %v872, %v974
        %v1196 = vsel %vm1191, %v873, %v976
        %v1197 = vsel %vm1191, %v874, %v978
        %v1198 = vsel %vm1191, %v875, %v980
        %v1199 = vsel %vm1191, %v876, %v982
        %v1200 = vsel %vm1191, %v877, %v984
        %v1201 = vsel %vm1191, %v878, %v986
        %v1202 = vsel %vm1191, %v879, %v988
        %v1203 = vsel %vm1191, %v880, %v990
        %v1204 = vsel %vm1191, %v881, %v992
        %v1205 = vsel %vm1191, %v882, %v994
        %v1206 = vsel %vm1191, %v883, %v996
        %v1207 = vsel %vm1191, %v884, %v998
        %v1208 = vsel %vm1191, %v885, %v1000
        %v1209 = vsel %vm1191, %v886, %v1002
        %v1210 = vsel %vm1191, %v887, %v1004
        %v1211 = vsel %vm1191, %v888, %v1006
        %v1212 = vsel %vm1191, %v889, %v1008
        %v1213 = vsel %vm1191, %v890, %v1010
        %v1214 = vsel %vm1191, %v891, %v1012
        %v1215 = vsel %vm1191, %v892, %v1014
        %v1216 = vsel %vm1191, %v893, %v1016
        %v1217 = vsel %vm1191, %v894, %v1018
        %v1218 = vsel %vm1191, %v895, %v1020
        %v1219 = vsel %vm1191, %v896, %v1022
        %v1220 = vsel %vm1191, %v897, %v1024
        %v1221 = vsel %vm1191, %v898, %v1026
        %v1222 = vsel %vm1191, %v899, %v1028
        %v1223 = vsel %vm1191, %v900, %v1030
        %vm1224 = vcmask 261120
        %v1225 = vsel %vm1224, %v1192, %v1096
        %v1226 = vsel %vm1224, %v1193, %v1098
        %v1227 = vsel %vm1224, %v1194, %v1100
        %v1228 = vsel %vm1224, %v1195, %v1102
        %v1229 = vsel %vm1224, %v1196, %v1104
        %v1230 = vsel %vm1224, %v1197, %v1106
        %v1231 = vsel %vm1224, %v1198, %v1108
        %v1232 = vsel %vm1224, %v1199, %v1110
        %v1233 = vsel %vm1224, %v1200, %v1112
        %v1234 = vsel %vm1224, %v1201, %v1114
        %v1235 = vsel %vm1224, %v1202, %v1116
        %v1236 = vsel %vm1224, %v1203, %v1118
        %v1237 = vsel %vm1224, %v1204, %v1120
        %v1238 = vsel %vm1224, %v1205, %v1122
        %v1239 = vsel %vm1224, %v1206, %v1124
        %v1240 = vsel %vm1224, %v1207, %v1126
        %v1241 = vsel %vm1224, %v1208, %v1128
        %v1242 = vsel %vm1224, %v1209, %v1130
        %v1243 = vsel %vm1224, %v1210, %v1132
        %v1244 = vsel %vm1224, %v1211, %v1134
        %v1245 = vsel %vm1224, %v1212, %v1136
        %v1246 = vsel %vm1224, %v1213, %v1138
        %v1247 = vsel %vm1224, %v1214, %v1140
        %v1248 = vsel %vm1224, %v1215, %v1142
        %v1249 = vsel %vm1224, %v1216, %v1144
        %v1250 = vsel %vm1224, %v1217, %v1146
        %v1251 = vsel %vm1224, %v1218, %v1148
        %v1252 = vsel %vm1224, %v1219, %v1150
        %v1253 = vsel %vm1224, %v1220, %v1152
        %v1254 = vsel %vm1224, %v1221, %v1154
        %v1255 = vsel %vm1224, %v1222, %v1156
        %v1256 = vsel %vm1224, %v1223, %v1158
        %vm1257 = vcmask 392192
        %1258 = vst.msk [vmem:[#allocation2] sm:$0xff] %vm1257, 0.0
        %1259 = vst.msk [vmem:[#allocation2 + $0x8] sm:$0xff] %vm1257, 0.0
        %s1260 = scalar_lea.vmem [#allocation2], 272
        %1261 = vst.msk [vmem:[%s1260] sm:$0xff] %vm1257, 0.0
        %1262 = vst.msk [vmem:[%s1260 + $0x8] sm:$0xff] %vm1257, 0.0
        %s1263 = scalar_lea.vmem [#allocation2], 16
        %1264 = vst.msk [vmem:[%s1263] sm:$0xff] %vm1257, %v1225
        %1265 = vst.msk [vmem:[%s1263 + $0x8] sm:$0xff] %vm1257, %v1226
        %1266 = vst.msk [vmem:[%s1263 + $0x10] sm:$0xff] %vm1257, %v1227
        %1267 = vst.msk [vmem:[%s1263 + $0x18] sm:$0xff] %vm1257, %v1228
        %1268 = vst.msk [vmem:[%s1263 + $0x20] sm:$0xff] %vm1257, %v1229
        %1269 = vst.msk [vmem:[%s1263 + $0x28] sm:$0xff] %vm1257, %v1230
        %1270 = vst.msk [vmem:[%s1263 + $0x30] sm:$0xff] %vm1257, %v1231
        %1271 = vst.msk [vmem:[%s1263 + $0x38] sm:$0xff] %vm1257, %v1232
        %1272 = vst.msk [vmem:[%s1263 + $0x40] sm:$0xff] %vm1257, %v1233
        %1273 = vst.msk [vmem:[%s1263 + $0x48] sm:$0xff] %vm1257, %v1234
        %1274 = vst.msk [vmem:[%s1263 + $0x50] sm:$0xff] %vm1257, %v1235
        %1275 = vst.msk [vmem:[%s1263 + $0x58] sm:$0xff] %vm1257, %v1236
        %1276 = vst.msk [vmem:[%s1263 + $0x60] sm:$0xff] %vm1257, %v1237
        %1277 = vst.msk [vmem:[%s1263 + $0x68] sm:$0xff] %vm1257, %v1238
        %1278 = vst.msk [vmem:[%s1263 + $0x70] sm:$0xff] %vm1257, %v1239
        %1279 = vst.msk [vmem:[%s1263 + $0x78] sm:$0xff] %vm1257, %v1240
        %1280 = vst.msk [vmem:[%s1263 + $0x80] sm:$0xff] %vm1257, %v1241
        %1281 = vst.msk [vmem:[%s1263 + $0x88] sm:$0xff] %vm1257, %v1242
        %1282 = vst.msk [vmem:[%s1263 + $0x90] sm:$0xff] %vm1257, %v1243
        %1283 = vst.msk [vmem:[%s1263 + $0x98] sm:$0xff] %vm1257, %v1244
        %1284 = vst.msk [vmem:[%s1263 + $0xa0] sm:$0xff] %vm1257, %v1245
        %1285 = vst.msk [vmem:[%s1263 + $0xa8] sm:$0xff] %vm1257, %v1246
        %1286 = vst.msk [vmem:[%s1263 + $0xb0] sm:$0xff] %vm1257, %v1247
        %1287 = vst.msk [vmem:[%s1263 + $0xb8] sm:$0xff] %vm1257, %v1248
        %1288 = vst.msk [vmem:[%s1263 + $0xc0] sm:$0xff] %vm1257, %v1249
        %1289 = vst.msk [vmem:[%s1263 + $0xc8] sm:$0xff] %vm1257, %v1250
        %1290 = vst.msk [vmem:[%s1263 + $0xd0] sm:$0xff] %vm1257, %v1251
        %1291 = vst.msk [vmem:[%s1263 + $0xd8] sm:$0xff] %vm1257, %v1252
        %1292 = vst.msk [vmem:[%s1263 + $0xe0] sm:$0xff] %vm1257, %v1253
        %1293 = vst.msk [vmem:[%s1263 + $0xe8] sm:$0xff] %vm1257, %v1254
        %1294 = vst.msk [vmem:[%s1263 + $0xf0] sm:$0xff] %vm1257, %v1255
        %1295 = vst.msk [vmem:[%s1263 + $0xf8] sm:$0xff] %vm1257, %v1256
        %v1296 = vld [vmem:[#allocation2] sm:$0xff]
        %v1297 = vld [vmem:[#allocation2 + $0x8] sm:$0xff]
        %v1298 = vld [vmem:[#allocation2 + $0x10] sm:$0xff]
        %v1299 = vld [vmem:[#allocation2 + $0x18] sm:$0xff]
        %v1300 = vld [vmem:[#allocation2 + $0x20] sm:$0xff]
        %v1301 = vld [vmem:[#allocation2 + $0x28] sm:$0xff]
        %v1302 = vld [vmem:[#allocation2 + $0x30] sm:$0xff]
        %v1303 = vld [vmem:[#allocation2 + $0x38] sm:$0xff]
        %v1304 = vld [vmem:[#allocation2 + $0x40] sm:$0xff]
        %v1305 = vld [vmem:[#allocation2 + $0x48] sm:$0xff]
        %v1306 = vld [vmem:[#allocation2 + $0x50] sm:$0xff]
        %v1307 = vld [vmem:[#allocation2 + $0x58] sm:$0xff]
        %v1308 = vld [vmem:[#allocation2 + $0x60] sm:$0xff]
        %v1309 = vld [vmem:[#allocation2 + $0x68] sm:$0xff]
        %v1310 = vld [vmem:[#allocation2 + $0x70] sm:$0xff]
        %v1311 = vld [vmem:[#allocation2 + $0x78] sm:$0xff]
        %v1312 = vld [vmem:[#allocation2 + $0x80] sm:$0xff]
        %v1313 = vld [vmem:[#allocation2 + $0x88] sm:$0xff]
        %v1314 = vld [vmem:[#allocation2 + $0x90] sm:$0xff]
        %v1315 = vld [vmem:[#allocation2 + $0x98] sm:$0xff]
        %v1316 = vld [vmem:[#allocation2 + $0xa0] sm:$0xff]
        %v1317 = vld [vmem:[#allocation2 + $0xa8] sm:$0xff]
        %v1318 = vld [vmem:[#allocation2 + $0xb0] sm:$0xff]
        %v1319 = vld [vmem:[#allocation2 + $0xb8] sm:$0xff]
        %v1320 = vld [vmem:[#allocation2 + $0xc0] sm:$0xff]
        %v1321 = vld [vmem:[#allocation2 + $0xc8] sm:$0xff]
        %v1322 = vld [vmem:[#allocation2 + $0xd0] sm:$0xff]
        %v1323 = vld [vmem:[#allocation2 + $0xd8] sm:$0xff]
        %v1324 = vld [vmem:[#allocation2 + $0xe0] sm:$0xff]
        %v1325 = vld [vmem:[#allocation2 + $0xe8] sm:$0xff]
        %v1326 = vld [vmem:[#allocation2 + $0xf0] sm:$0xff]
        %v1327 = vld [vmem:[#allocation2 + $0xf8] sm:$0xff]
        %v1328 = vld [vmem:[%s4] sm:$0xff]
        %v1329 = vld [vmem:[%s4 + $0x8] sm:$0xff]
        %v1330 = vld [vmem:[%s4 + $0x10] sm:$0xff]
        %v1331 = vld [vmem:[%s4 + $0x18] sm:$0xff]
        %v1332 = vld [vmem:[%s4 + $0x20] sm:$0xff]
        %v1333 = vld [vmem:[%s4 + $0x28] sm:$0xff]
        %v1334 = vld [vmem:[%s1263] sm:$0xff]
        %v1335 = vld [vmem:[%s1263 + $0x8] sm:$0xff]
        %v1336 = vld [vmem:[%s1263 + $0x10] sm:$0xff]
        %v1337 = vld [vmem:[%s1263 + $0x18] sm:$0xff]
        %v1338 = vld [vmem:[%s1263 + $0x20] sm:$0xff]
        %v1339 = vld [vmem:[%s1263 + $0x28] sm:$0xff]
        %v1340 = vld [vmem:[%s1263 + $0x30] sm:$0xff]
        %v1341 = vld [vmem:[%s1263 + $0x38] sm:$0xff]
        %v1342 = vld [vmem:[%s1263 + $0x40] sm:$0xff]
        %v1343 = vld [vmem:[%s1263 + $0x48] sm:$0xff]
        %v1344 = vld [vmem:[%s1263 + $0x50] sm:$0xff]
        %v1345 = vld [vmem:[%s1263 + $0x58] sm:$0xff]
        %v1346 = vld [vmem:[%s1263 + $0x60] sm:$0xff]
        %v1347 = vld [vmem:[%s1263 + $0x68] sm:$0xff]
        %v1348 = vld [vmem:[%s1263 + $0x70] sm:$0xff]
        %v1349 = vld [vmem:[%s1263 + $0x78] sm:$0xff]
        %v1350 = vld [vmem:[%s1263 + $0x80] sm:$0xff]
        %v1351 = vld [vmem:[%s1263 + $0x88] sm:$0xff]
        %v1352 = vld [vmem:[%s1263 + $0x90] sm:$0xff]
        %v1353 = vld [vmem:[%s1263 + $0x98] sm:$0xff]
        %v1354 = vld [vmem:[%s1263 + $0xa0] sm:$0xff]
        %v1355 = vld [vmem:[%s1263 + $0xa8] sm:$0xff]
        %v1356 = vld [vmem:[%s1263 + $0xb0] sm:$0xff]
        %v1357 = vld [vmem:[%s1263 + $0xb8] sm:$0xff]
        %v1358 = vld [vmem:[%s1263 + $0xc0] sm:$0xff]
        %v1359 = vld [vmem:[%s1263 + $0xc8] sm:$0xff]
        %v1360 = vld [vmem:[%s1263 + $0xd0] sm:$0xff]
        %v1361 = vld [vmem:[%s1263 + $0xd8] sm:$0xff]
        %v1362 = vld [vmem:[%s1263 + $0xe0] sm:$0xff]
        %v1363 = vld [vmem:[%s1263 + $0xe8] sm:$0xff]
        %v1364 = vld [vmem:[%s1263 + $0xf0] sm:$0xff]
        %v1365 = vld [vmem:[%s1263 + $0xf8] sm:$0xff]
        %s1366 = scalar_lea.vmem %s4, 48
        %v1367 = vld [vmem:[%s1366] sm:$0xff]
        %v1368 = vld [vmem:[%s1366 + $0x8] sm:$0xff]
        %v1369 = vld [vmem:[%s1366 + $0x10] sm:$0xff]
        %v1370 = vld [vmem:[%s1366 + $0x18] sm:$0xff]
        %v1371 = vld [vmem:[%s1366 + $0x20] sm:$0xff]
        %v1372 = vld [vmem:[%s1366 + $0x28] sm:$0xff]
        %v1374 = vsel %vm1257, %v1334, 0
        %v1377 = vsel %vm1257, %v1335, 0
        %v1380 = vsel %vm1257, %v1336, 0
        %v1383 = vsel %vm1257, %v1337, 0
        %v1386 = vsel %vm1257, %v1338, 0
        %v1389 = vsel %vm1257, %v1339, 0
        %v1392 = vsel %vm1257, %v1340, 0
        %v1395 = vsel %vm1257, %v1341, 0
        %v1398 = vsel %vm1257, %v1342, 0
        %v1401 = vsel %vm1257, %v1343, 0
        %v1404 = vsel %vm1257, %v1344, 0
        %v1407 = vsel %vm1257, %v1345, 0
        %v1410 = vsel %vm1257, %v1346, 0
        %v1413 = vsel %vm1257, %v1347, 0
        %v1416 = vsel %vm1257, %v1348, 0
        %v1419 = vsel %vm1257, %v1349, 0
        %v1422 = vsel %vm1257, %v1350, 0
        %v1425 = vsel %vm1257, %v1351, 0
        %v1428 = vsel %vm1257, %v1352, 0
        %v1431 = vsel %vm1257, %v1353, 0
        %v1434 = vsel %vm1257, %v1354, 0
        %v1437 = vsel %vm1257, %v1355, 0
        %v1440 = vsel %vm1257, %v1356, 0
        %v1443 = vsel %vm1257, %v1357, 0
        %v1446 = vsel %vm1257, %v1358, 0
        %v1449 = vsel %vm1257, %v1359, 0
        %v1452 = vsel %vm1257, %v1360, 0
        %v1455 = vsel %vm1257, %v1361, 0
        %v1458 = vsel %vm1257, %v1362, 0
        %v1461 = vsel %vm1257, %v1363, 0
        %v1464 = vsel %vm1257, %v1364, 0
        %v1467 = vsel %vm1257, %v1365, 0
        %1469 = vmatpush.msra.mxu0 0.0
        %1470 = vmatpush.msra.mxu0 0.0
        %1471 = vmatpush.msra.mxu0 0.0
        %1472 = vmatpush.msra.mxu0 0.0
        %1473 = vmatpush.msra.mxu0 0.0
        %1474 = vmatpush.msra.mxu0 0.0
        %1475 = vmatpush.msra.mxu0 0.0
        %1476 = vmatpush.msra.mxu0 0.0
        %1477 = vmatpush.msra.mxu0 0.0
        %1478 = vmatpush.msra.mxu0 0.0
        %1479 = vmatpush.msra.mxu0 %v1372
        %1480 = vmatpush.msra.mxu0 %v1371
        %1481 = vmatpush.msra.mxu0 %v1370
        %1482 = vmatpush.msra.mxu0 %v1369
        %1483 = vmatpush.msra.mxu0 %v1368
        %1484 = vmatpush.msra.mxu0 %v1367
        %1485 = vmatmul.f32.gmra.mxu0 %v1374
        %v1486 = vpop.f32.mrf.mxu0
        %v1487 = vadd.f32 0.0, %v1486
        %1488 = vmatmul.f32.gmra.mxu0 %v1377
        %v1489 = vpop.f32.mrf.mxu0
        %v1490 = vadd.f32 0.0, %v1489
        %1491 = vmatmul.f32.gmra.mxu0 %v1380
        %v1492 = vpop.f32.mrf.mxu0
        %v1493 = vadd.f32 0.0, %v1492
        %1494 = vmatmul.f32.gmra.mxu0 %v1383
        %v1495 = vpop.f32.mrf.mxu0
        %v1496 = vadd.f32 0.0, %v1495
        %1497 = vmatmul.f32.gmra.mxu0 %v1386
        %v1498 = vpop.f32.mrf.mxu0
        %v1499 = vadd.f32 0.0, %v1498
        %1500 = vmatmul.f32.gmra.mxu0 %v1389
        %v1501 = vpop.f32.mrf.mxu0
        %v1502 = vadd.f32 0.0, %v1501
        %1503 = vmatmul.f32.gmra.mxu0 %v1392
        %v1504 = vpop.f32.mrf.mxu0
        %v1505 = vadd.f32 0.0, %v1504
        %1506 = vmatmul.f32.gmra.mxu0 %v1395
        %v1507 = vpop.f32.mrf.mxu0
        %v1508 = vadd.f32 0.0, %v1507
        %1509 = vmatmul.f32.gmra.mxu0 %v1398
        %v1510 = vpop.f32.mrf.mxu0
        %v1511 = vadd.f32 0.0, %v1510
        %1512 = vmatmul.f32.gmra.mxu0 %v1401
        %v1513 = vpop.f32.mrf.mxu0
        %v1514 = vadd.f32 0.0, %v1513
        %1515 = vmatmul.f32.gmra.mxu0 %v1404
        %v1516 = vpop.f32.mrf.mxu0
        %v1517 = vadd.f32 0.0, %v1516
        %1518 = vmatmul.f32.gmra.mxu0 %v1407
        %v1519 = vpop.f32.mrf.mxu0
        %v1520 = vadd.f32 0.0, %v1519
        %1521 = vmatmul.f32.gmra.mxu0 %v1410
        %v1522 = vpop.f32.mrf.mxu0
        %v1523 = vadd.f32 0.0, %v1522
        %1524 = vmatmul.f32.gmra.mxu0 %v1413
        %v1525 = vpop.f32.mrf.mxu0
        %v1526 = vadd.f32 0.0, %v1525
        %1527 = vmatmul.f32.gmra.mxu0 %v1416
        %v1528 = vpop.f32.mrf.mxu0
        %v1529 = vadd.f32 0.0, %v1528
        %1530 = vmatmul.f32.gmra.mxu0 %v1419
        %v1531 = vpop.f32.mrf.mxu0
        %v1532 = vadd.f32 0.0, %v1531
        %1533 = vmatmul.f32.gmra.mxu0 %v1422
        %v1534 = vpop.f32.mrf.mxu0
        %v1535 = vadd.f32 0.0, %v1534
        %1536 = vmatmul.f32.gmra.mxu0 %v1425
        %v1537 = vpop.f32.mrf.mxu0
        %v1538 = vadd.f32 0.0, %v1537
        %1539 = vmatmul.f32.gmra.mxu0 %v1428
        %v1540 = vpop.f32.mrf.mxu0
        %v1541 = vadd.f32 0.0, %v1540
        %1542 = vmatmul.f32.gmra.mxu0 %v1431
        %v1543 = vpop.f32.mrf.mxu0
        %v1544 = vadd.f32 0.0, %v1543
        %1545 = vmatmul.f32.gmra.mxu0 %v1434
        %v1546 = vpop.f32.mrf.mxu0
        %v1547 = vadd.f32 0.0, %v1546
        %1548 = vmatmul.f32.gmra.mxu0 %v1437
        %v1549 = vpop.f32.mrf.mxu0
        %v1550 = vadd.f32 0.0, %v1549
        %1551 = vmatmul.f32.gmra.mxu0 %v1440
        %v1552 = vpop.f32.mrf.mxu0
        %v1553 = vadd.f32 0.0, %v1552
        %1554 = vmatmul.f32.gmra.mxu0 %v1443
        %v1555 = vpop.f32.mrf.mxu0
        %v1556 = vadd.f32 0.0, %v1555
        %1557 = vmatmul.f32.gmra.mxu0 %v1446
        %v1558 = vpop.f32.mrf.mxu0
        %v1559 = vadd.f32 0.0, %v1558
        %1560 = vmatmul.f32.gmra.mxu0 %v1449
        %v1561 = vpop.f32.mrf.mxu0
        %v1562 = vadd.f32 0.0, %v1561
        %1563 = vmatmul.f32.gmra.mxu0 %v1452
        %v1564 = vpop.f32.mrf.mxu0
        %v1565 = vadd.f32 0.0, %v1564
        %1566 = vmatmul.f32.gmra.mxu0 %v1455
        %v1567 = vpop.f32.mrf.mxu0
        %v1568 = vadd.f32 0.0, %v1567
        %1569 = vmatmul.f32.gmra.mxu0 %v1458
        %v1570 = vpop.f32.mrf.mxu0
        %v1571 = vadd.f32 0.0, %v1570
        %1572 = vmatmul.f32.gmra.mxu0 %v1461
        %v1573 = vpop.f32.mrf.mxu0
        %v1574 = vadd.f32 0.0, %v1573
        %1575 = vmatmul.f32.gmra.mxu0 %v1464
        %v1576 = vpop.f32.mrf.mxu0
        %v1577 = vadd.f32 0.0, %v1576
        %1578 = vmatmul.f32.gmra.mxu0 %v1467
        %v1579 = vpop.f32.mrf.mxu0
        %v1580 = vadd.f32 0.0, %v1579
        %1581 = vdwg.mxu0
        %v1583 = vsel %vm1257, %v1296, 0
        %v1586 = vsel %vm1257, %v1297, 0
        %v1589 = vsel %vm1257, %v1298, 0
        %v1592 = vsel %vm1257, %v1299, 0
        %v1595 = vsel %vm1257, %v1300, 0
        %v1598 = vsel %vm1257, %v1301, 0
        %v1601 = vsel %vm1257, %v1302, 0
        %v1604 = vsel %vm1257, %v1303, 0
        %v1607 = vsel %vm1257, %v1304, 0
        %v1610 = vsel %vm1257, %v1305, 0
        %v1613 = vsel %vm1257, %v1306, 0
        %v1616 = vsel %vm1257, %v1307, 0
        %v1619 = vsel %vm1257, %v1308, 0
        %v1622 = vsel %vm1257, %v1309, 0
        %v1625 = vsel %vm1257, %v1310, 0
        %v1628 = vsel %vm1257, %v1311, 0
        %v1631 = vsel %vm1257, %v1312, 0
        %v1634 = vsel %vm1257, %v1313, 0
        %v1637 = vsel %vm1257, %v1314, 0
        %v1640 = vsel %vm1257, %v1315, 0
        %v1643 = vsel %vm1257, %v1316, 0
        %v1646 = vsel %vm1257, %v1317, 0
        %v1649 = vsel %vm1257, %v1318, 0
        %v1652 = vsel %vm1257, %v1319, 0
        %v1655 = vsel %vm1257, %v1320, 0
        %v1658 = vsel %vm1257, %v1321, 0
        %v1661 = vsel %vm1257, %v1322, 0
        %v1664 = vsel %vm1257, %v1323, 0
        %v1667 = vsel %vm1257, %v1324, 0
        %v1670 = vsel %vm1257, %v1325, 0
        %v1673 = vsel %vm1257, %v1326, 0
        %v1676 = vsel %vm1257, %v1327, 0
        %1678 = vmatpush.msra.mxu0 0.0
        %1679 = vmatpush.msra.mxu0 0.0
        %1680 = vmatpush.msra.mxu0 0.0
        %1681 = vmatpush.msra.mxu0 0.0
        %1682 = vmatpush.msra.mxu0 0.0
        %1683 = vmatpush.msra.mxu0 0.0
        %1684 = vmatpush.msra.mxu0 0.0
        %1685 = vmatpush.msra.mxu0 0.0
        %1686 = vmatpush.msra.mxu0 0.0
        %1687 = vmatpush.msra.mxu0 0.0
        %1688 = vmatpush.msra.mxu0 %v1333
        %1689 = vmatpush.msra.mxu0 %v1332
        %1690 = vmatpush.msra.mxu0 %v1331
        %1691 = vmatpush.msra.mxu0 %v1330
        %1692 = vmatpush.msra.mxu0 %v1329
        %1693 = vmatpush.msra.mxu0 %v1328
        %1694 = vmatmul.f32.gmra.mxu0 %v1583
        %v1695 = vpop.f32.mrf.mxu0
        %v1696 = vadd.f32 %v1487, %v1695
        %1697 = vmatmul.f32.gmra.mxu0 %v1586
        %v1698 = vpop.f32.mrf.mxu0
        %v1699 = vadd.f32 %v1490, %v1698
        %1700 = vmatmul.f32.gmra.mxu0 %v1589
        %v1701 = vpop.f32.mrf.mxu0
        %v1702 = vadd.f32 %v1493, %v1701
        %1703 = vmatmul.f32.gmra.mxu0 %v1592
        %v1704 = vpop.f32.mrf.mxu0
        %v1705 = vadd.f32 %v1496, %v1704
        %1706 = vmatmul.f32.gmra.mxu0 %v1595
        %v1707 = vpop.f32.mrf.mxu0
        %v1708 = vadd.f32 %v1499, %v1707
        %1709 = vmatmul.f32.gmra.mxu0 %v1598
        %v1710 = vpop.f32.mrf.mxu0
        %v1711 = vadd.f32 %v1502, %v1710
        %1712 = vmatmul.f32.gmra.mxu0 %v1601
        %v1713 = vpop.f32.mrf.mxu0
        %v1714 = vadd.f32 %v1505, %v1713
        %1715 = vmatmul.f32.gmra.mxu0 %v1604
        %v1716 = vpop.f32.mrf.mxu0
        %v1717 = vadd.f32 %v1508, %v1716
        %1718 = vmatmul.f32.gmra.mxu0 %v1607
        %v1719 = vpop.f32.mrf.mxu0
        %v1720 = vadd.f32 %v1511, %v1719
        %1721 = vmatmul.f32.gmra.mxu0 %v1610
        %v1722 = vpop.f32.mrf.mxu0
        %v1723 = vadd.f32 %v1514, %v1722
        %1724 = vmatmul.f32.gmra.mxu0 %v1613
        %v1725 = vpop.f32.mrf.mxu0
        %v1726 = vadd.f32 %v1517, %v1725
        %1727 = vmatmul.f32.gmra.mxu0 %v1616
        %v1728 = vpop.f32.mrf.mxu0
        %v1729 = vadd.f32 %v1520, %v1728
        %1730 = vmatmul.f32.gmra.mxu0 %v1619
        %v1731 = vpop.f32.mrf.mxu0
        %v1732 = vadd.f32 %v1523, %v1731
        %1733 = vmatmul.f32.gmra.mxu0 %v1622
        %v1734 = vpop.f32.mrf.mxu0
        %v1735 = vadd.f32 %v1526, %v1734
        %1736 = vmatmul.f32.gmra.mxu0 %v1625
        %v1737 = vpop.f32.mrf.mxu0
        %v1738 = vadd.f32 %v1529, %v1737
        %1739 = vmatmul.f32.gmra.mxu0 %v1628
        %v1740 = vpop.f32.mrf.mxu0
        %v1741 = vadd.f32 %v1532, %v1740
        %1742 = vmatmul.f32.gmra.mxu0 %v1631
        %v1743 = vpop.f32.mrf.mxu0
        %v1744 = vadd.f32 %v1535, %v1743
        %1745 = vmatmul.f32.gmra.mxu0 %v1634
        %v1746 = vpop.f32.mrf.mxu0
        %v1747 = vadd.f32 %v1538, %v1746
        %1748 = vmatmul.f32.gmra.mxu0 %v1637
        %v1749 = vpop.f32.mrf.mxu0
        %v1750 = vadd.f32 %v1541, %v1749
        %1751 = vmatmul.f32.gmra.mxu0 %v1640
        %v1752 = vpop.f32.mrf.mxu0
        %v1753 = vadd.f32 %v1544, %v1752
        %1754 = vmatmul.f32.gmra.mxu0 %v1643
        %v1755 = vpop.f32.mrf.mxu0
        %v1756 = vadd.f32 %v1547, %v1755
        %1757 = vmatmul.f32.gmra.mxu0 %v1646
        %v1758 = vpop.f32.mrf.mxu0
        %v1759 = vadd.f32 %v1550, %v1758
        %1760 = vmatmul.f32.gmra.mxu0 %v1649
        %v1761 = vpop.f32.mrf.mxu0
        %v1762 = vadd.f32 %v1553, %v1761
        %1763 = vmatmul.f32.gmra.mxu0 %v1652
        %v1764 = vpop.f32.mrf.mxu0
        %v1765 = vadd.f32 %v1556, %v1764
        %1766 = vmatmul.f32.gmra.mxu0 %v1655
        %v1767 = vpop.f32.mrf.mxu0
        %v1768 = vadd.f32 %v1559, %v1767
        %1769 = vmatmul.f32.gmra.mxu0 %v1658
        %v1770 = vpop.f32.mrf.mxu0
        %v1771 = vadd.f32 %v1562, %v1770
        %1772 = vmatmul.f32.gmra.mxu0 %v1661
        %v1773 = vpop.f32.mrf.mxu0
        %v1774 = vadd.f32 %v1565, %v1773
        %1775 = vmatmul.f32.gmra.mxu0 %v1664
        %v1776 = vpop.f32.mrf.mxu0
        %v1777 = vadd.f32 %v1568, %v1776
        %1778 = vmatmul.f32.gmra.mxu0 %v1667
        %v1779 = vpop.f32.mrf.mxu0
        %v1780 = vadd.f32 %v1571, %v1779
        %1781 = vmatmul.f32.gmra.mxu0 %v1670
        %v1782 = vpop.f32.mrf.mxu0
        %v1783 = vadd.f32 %v1574, %v1782
        %1784 = vmatmul.f32.gmra.mxu0 %v1673
        %v1785 = vpop.f32.mrf.mxu0
        %v1786 = vadd.f32 %v1577, %v1785
        %1787 = vmatmul.f32.gmra.mxu0 %v1676
        %v1788 = vpop.f32.mrf.mxu0
        %v1789 = vadd.f32 %v1580, %v1788
        %1790 = vdwg.mxu0
        %s1791 = scalar_lea.vmem [#allocation2], 32
        %v1792 = vld [vmem:[%s1791] sm:$0xff]
        %v1793 = vld [vmem:[%s1791 + $0x8] sm:$0xff]
        %v1794 = vld [vmem:[%s1791 + $0x10] sm:$0xff]
        %v1795 = vld [vmem:[%s1791 + $0x18] sm:$0xff]
        %v1796 = vld [vmem:[%s1791 + $0x20] sm:$0xff]
        %v1797 = vld [vmem:[%s1791 + $0x28] sm:$0xff]
        %v1798 = vld [vmem:[%s1791 + $0x30] sm:$0xff]
        %v1799 = vld [vmem:[%s1791 + $0x38] sm:$0xff]
        %v1800 = vld [vmem:[%s1791 + $0x40] sm:$0xff]
        %v1801 = vld [vmem:[%s1791 + $0x48] sm:$0xff]
        %v1802 = vld [vmem:[%s1791 + $0x50] sm:$0xff]
        %v1803 = vld [vmem:[%s1791 + $0x58] sm:$0xff]
        %v1804 = vld [vmem:[%s1791 + $0x60] sm:$0xff]
        %v1805 = vld [vmem:[%s1791 + $0x68] sm:$0xff]
        %v1806 = vld [vmem:[%s1791 + $0x70] sm:$0xff]
        %v1807 = vld [vmem:[%s1791 + $0x78] sm:$0xff]
        %v1808 = vld [vmem:[%s1791 + $0x80] sm:$0xff]
        %v1809 = vld [vmem:[%s1791 + $0x88] sm:$0xff]
        %v1810 = vld [vmem:[%s1791 + $0x90] sm:$0xff]
        %v1811 = vld [vmem:[%s1791 + $0x98] sm:$0xff]
        %v1812 = vld [vmem:[%s1791 + $0xa0] sm:$0xff]
        %v1813 = vld [vmem:[%s1791 + $0xa8] sm:$0xff]
        %v1814 = vld [vmem:[%s1791 + $0xb0] sm:$0xff]
        %v1815 = vld [vmem:[%s1791 + $0xb8] sm:$0xff]
        %v1816 = vld [vmem:[%s1791 + $0xc0] sm:$0xff]
        %v1817 = vld [vmem:[%s1791 + $0xc8] sm:$0xff]
        %v1818 = vld [vmem:[%s1791 + $0xd0] sm:$0xff]
        %v1819 = vld [vmem:[%s1791 + $0xd8] sm:$0xff]
        %v1820 = vld [vmem:[%s1791 + $0xe0] sm:$0xff]
        %v1821 = vld [vmem:[%s1791 + $0xe8] sm:$0xff]
        %v1822 = vld [vmem:[%s1791 + $0xf0] sm:$0xff]
        %v1823 = vld [vmem:[%s1791 + $0xf8] sm:$0xff]
        %s1824 = scalar_lea.vmem %s4, 96
        %v1825 = vld [vmem:[%s1824] sm:$0xff]
        %v1826 = vld [vmem:[%s1824 + $0x8] sm:$0xff]
        %v1827 = vld [vmem:[%s1824 + $0x10] sm:$0xff]
        %v1828 = vld [vmem:[%s1824 + $0x18] sm:$0xff]
        %v1829 = vld [vmem:[%s1824 + $0x20] sm:$0xff]
        %v1830 = vld [vmem:[%s1824 + $0x28] sm:$0xff]
        %v1832 = vsel %vm1257, %v1792, 0
        %v1835 = vsel %vm1257, %v1793, 0
        %v1838 = vsel %vm1257, %v1794, 0
        %v1841 = vsel %vm1257, %v1795, 0
        %v1844 = vsel %vm1257, %v1796, 0
        %v1847 = vsel %vm1257, %v1797, 0
        %v1850 = vsel %vm1257, %v1798, 0
        %v1853 = vsel %vm1257, %v1799, 0
        %v1856 = vsel %vm1257, %v1800, 0
        %v1859 = vsel %vm1257, %v1801, 0
        %v1862 = vsel %vm1257, %v1802, 0
        %v1865 = vsel %vm1257, %v1803, 0
        %v1868 = vsel %vm1257, %v1804, 0
        %v1871 = vsel %vm1257, %v1805, 0
        %v1874 = vsel %vm1257, %v1806, 0
        %v1877 = vsel %vm1257, %v1807, 0
        %v1880 = vsel %vm1257, %v1808, 0
        %v1883 = vsel %vm1257, %v1809, 0
        %v1886 = vsel %vm1257, %v1810, 0
        %v1889 = vsel %vm1257, %v1811, 0
        %v1892 = vsel %vm1257, %v1812, 0
        %v1895 = vsel %vm1257, %v1813, 0
        %v1898 = vsel %vm1257, %v1814, 0
        %v1901 = vsel %vm1257, %v1815, 0
        %v1904 = vsel %vm1257, %v1816, 0
        %v1907 = vsel %vm1257, %v1817, 0
        %v1910 = vsel %vm1257, %v1818, 0
        %v1913 = vsel %vm1257, %v1819, 0
        %v1916 = vsel %vm1257, %v1820, 0
        %v1919 = vsel %vm1257, %v1821, 0
        %v1922 = vsel %vm1257, %v1822, 0
        %v1925 = vsel %vm1257, %v1823, 0
        %1927 = vmatpush.msra.mxu0 0.0
        %1928 = vmatpush.msra.mxu0 0.0
        %1929 = vmatpush.msra.mxu0 0.0
        %1930 = vmatpush.msra.mxu0 0.0
        %1931 = vmatpush.msra.mxu0 0.0
        %1932 = vmatpush.msra.mxu0 0.0
        %1933 = vmatpush.msra.mxu0 0.0
        %1934 = vmatpush.msra.mxu0 0.0
        %1935 = vmatpush.msra.mxu0 0.0
        %1936 = vmatpush.msra.mxu0 0.0
        %1937 = vmatpush.msra.mxu0 %v1830
        %1938 = vmatpush.msra.mxu0 %v1829
        %1939 = vmatpush.msra.mxu0 %v1828
        %1940 = vmatpush.msra.mxu0 %v1827
        %1941 = vmatpush.msra.mxu0 %v1826
        %1942 = vmatpush.msra.mxu0 %v1825
        %1943 = vmatmul.f32.gmra.mxu0 %v1832
        %v1944 = vpop.f32.mrf.mxu0
        %v1945 = vadd.f32 0.0, %v1944
        %1946 = vmatmul.f32.gmra.mxu0 %v1835
        %v1947 = vpop.f32.mrf.mxu0
        %v1948 = vadd.f32 0.0, %v1947
        %1949 = vmatmul.f32.gmra.mxu0 %v1838
        %v1950 = vpop.f32.mrf.mxu0
        %v1951 = vadd.f32 0.0, %v1950
        %1952 = vmatmul.f32.gmra.mxu0 %v1841
        %v1953 = vpop.f32.mrf.mxu0
        %v1954 = vadd.f32 0.0, %v1953
        %1955 = vmatmul.f32.gmra.mxu0 %v1844
        %v1956 = vpop.f32.mrf.mxu0
        %v1957 = vadd.f32 0.0, %v1956
        %1958 = vmatmul.f32.gmra.mxu0 %v1847
        %v1959 = vpop.f32.mrf.mxu0
        %v1960 = vadd.f32 0.0, %v1959
        %1961 = vmatmul.f32.gmra.mxu0 %v1850
        %v1962 = vpop.f32.mrf.mxu0
        %v1963 = vadd.f32 0.0, %v1962
        %1964 = vmatmul.f32.gmra.mxu0 %v1853
        %v1965 = vpop.f32.mrf.mxu0
        %v1966 = vadd.f32 0.0, %v1965
        %1967 = vmatmul.f32.gmra.mxu0 %v1856
        %v1968 = vpop.f32.mrf.mxu0
        %v1969 = vadd.f32 0.0, %v1968
        %1970 = vmatmul.f32.gmra.mxu0 %v1859
        %v1971 = vpop.f32.mrf.mxu0
        %v1972 = vadd.f32 0.0, %v1971
        %1973 = vmatmul.f32.gmra.mxu0 %v1862
        %v1974 = vpop.f32.mrf.mxu0
        %v1975 = vadd.f32 0.0, %v1974
        %1976 = vmatmul.f32.gmra.mxu0 %v1865
        %v1977 = vpop.f32.mrf.mxu0
        %v1978 = vadd.f32 0.0, %v1977
        %1979 = vmatmul.f32.gmra.mxu0 %v1868
        %v1980 = vpop.f32.mrf.mxu0
        %v1981 = vadd.f32 0.0, %v1980
        %1982 = vmatmul.f32.gmra.mxu0 %v1871
        %v1983 = vpop.f32.mrf.mxu0
        %v1984 = vadd.f32 0.0, %v1983
        %1985 = vmatmul.f32.gmra.mxu0 %v1874
        %v1986 = vpop.f32.mrf.mxu0
        %v1987 = vadd.f32 0.0, %v1986
        %1988 = vmatmul.f32.gmra.mxu0 %v1877
        %v1989 = vpop.f32.mrf.mxu0
        %v1990 = vadd.f32 0.0, %v1989
        %1991 = vmatmul.f32.gmra.mxu0 %v1880
        %v1992 = vpop.f32.mrf.mxu0
        %v1993 = vadd.f32 0.0, %v1992
        %1994 = vmatmul.f32.gmra.mxu0 %v1883
        %v1995 = vpop.f32.mrf.mxu0
        %v1996 = vadd.f32 0.0, %v1995
        %1997 = vmatmul.f32.gmra.mxu0 %v1886
        %v1998 = vpop.f32.mrf.mxu0
        %v1999 = vadd.f32 0.0, %v1998
        %2000 = vmatmul.f32.gmra.mxu0 %v1889
        %v2001 = vpop.f32.mrf.mxu0
        %v2002 = vadd.f32 0.0, %v2001
        %2003 = vmatmul.f32.gmra.mxu0 %v1892
        %v2004 = vpop.f32.mrf.mxu0
        %v2005 = vadd.f32 0.0, %v2004
        %2006 = vmatmul.f32.gmra.mxu0 %v1895
        %v2007 = vpop.f32.mrf.mxu0
        %v2008 = vadd.f32 0.0, %v2007
        %2009 = vmatmul.f32.gmra.mxu0 %v1898
        %v2010 = vpop.f32.mrf.mxu0
        %v2011 = vadd.f32 0.0, %v2010
        %2012 = vmatmul.f32.gmra.mxu0 %v1901
        %v2013 = vpop.f32.mrf.mxu0
        %v2014 = vadd.f32 0.0, %v2013
        %2015 = vmatmul.f32.gmra.mxu0 %v1904
        %v2016 = vpop.f32.mrf.mxu0
        %v2017 = vadd.f32 0.0, %v2016
        %2018 = vmatmul.f32.gmra.mxu0 %v1907
        %v2019 = vpop.f32.mrf.mxu0
        %v2020 = vadd.f32 0.0, %v2019
        %2021 = vmatmul.f32.gmra.mxu0 %v1910
        %v2022 = vpop.f32.mrf.mxu0
        %v2023 = vadd.f32 0.0, %v2022
        %2024 = vmatmul.f32.gmra.mxu0 %v1913
        %v2025 = vpop.f32.mrf.mxu0
        %v2026 = vadd.f32 0.0, %v2025
        %2027 = vmatmul.f32.gmra.mxu0 %v1916
        %v2028 = vpop.f32.mrf.mxu0
        %v2029 = vadd.f32 0.0, %v2028
        %2030 = vmatmul.f32.gmra.mxu0 %v1919
        %v2031 = vpop.f32.mrf.mxu0
        %v2032 = vadd.f32 0.0, %v2031
        %2033 = vmatmul.f32.gmra.mxu0 %v1922
        %v2034 = vpop.f32.mrf.mxu0
        %v2035 = vadd.f32 0.0, %v2034
        %2036 = vmatmul.f32.gmra.mxu0 %v1925
        %v2037 = vpop.f32.mrf.mxu0
        %v2038 = vadd.f32 0.0, %v2037
        %2039 = vdwg.mxu0
        %v2040 = vadd.f32 %v1696, %v1945
        %v2041 = vadd.f32 %v1699, %v1948
        %v2042 = vadd.f32 %v1702, %v1951
        %v2043 = vadd.f32 %v1705, %v1954
        %v2044 = vadd.f32 %v1708, %v1957
        %v2045 = vadd.f32 %v1711, %v1960
        %v2046 = vadd.f32 %v1714, %v1963
        %v2047 = vadd.f32 %v1717, %v1966
        %v2048 = vadd.f32 %v1720, %v1969
        %v2049 = vadd.f32 %v1723, %v1972
        %v2050 = vadd.f32 %v1726, %v1975
        %v2051 = vadd.f32 %v1729, %v1978
        %v2052 = vadd.f32 %v1732, %v1981
        %v2053 = vadd.f32 %v1735, %v1984
        %v2054 = vadd.f32 %v1738, %v1987
        %v2055 = vadd.f32 %v1741, %v1990
        %v2056 = vadd.f32 %v1744, %v1993
        %v2057 = vadd.f32 %v1747, %v1996
        %v2058 = vadd.f32 %v1750, %v1999
        %v2059 = vadd.f32 %v1753, %v2002
        %v2060 = vadd.f32 %v1756, %v2005
        %v2061 = vadd.f32 %v1759, %v2008
        %v2062 = vadd.f32 %v1762, %v2011
        %v2063 = vadd.f32 %v1765, %v2014
        %v2064 = vadd.f32 %v1768, %v2017
        %v2065 = vadd.f32 %v1771, %v2020
        %v2066 = vadd.f32 %v1774, %v2023
        %v2067 = vadd.f32 %v1777, %v2026
        %v2068 = vadd.f32 %v1780, %v2029
        %v2069 = vadd.f32 %v1783, %v2032
        %v2070 = vadd.f32 %v1786, %v2035
        %v2071 = vadd.f32 %v1789, %v2038
        %v2072 = vld [vmem:[%s5] sm:$0x1]
        %v2074 = vperm.slane %v2072, 0
        %v2076 = vmul.f32 %v2040, %v2074
        %v2077 = vmul.f32 %v2041, %v2074
        %v2078 = vmul.f32 %v2042, %v2074
        %v2079 = vmul.f32 %v2043, %v2074
        %v2080 = vmul.f32 %v2044, %v2074
        %v2081 = vmul.f32 %v2045, %v2074
        %v2082 = vmul.f32 %v2046, %v2074
        %v2083 = vmul.f32 %v2047, %v2074
        %v2084 = vmul.f32 %v2048, %v2074
        %v2085 = vmul.f32 %v2049, %v2074
        %v2086 = vmul.f32 %v2050, %v2074
        %v2087 = vmul.f32 %v2051, %v2074
        %v2088 = vmul.f32 %v2052, %v2074
        %v2089 = vmul.f32 %v2053, %v2074
        %v2090 = vmul.f32 %v2054, %v2074
        %v2091 = vmul.f32 %v2055, %v2074
        %v2092 = vmul.f32 %v2056, %v2074
        %v2093 = vmul.f32 %v2057, %v2074
        %v2094 = vmul.f32 %v2058, %v2074
        %v2095 = vmul.f32 %v2059, %v2074
        %v2096 = vmul.f32 %v2060, %v2074
        %v2097 = vmul.f32 %v2061, %v2074
        %v2098 = vmul.f32 %v2062, %v2074
        %v2099 = vmul.f32 %v2063, %v2074
        %v2100 = vmul.f32 %v2064, %v2074
        %v2101 = vmul.f32 %v2065, %v2074
        %v2102 = vmul.f32 %v2066, %v2074
        %v2103 = vmul.f32 %v2067, %v2074
        %v2104 = vmul.f32 %v2068, %v2074
        %v2105 = vmul.f32 %v2069, %v2074
        %v2106 = vmul.f32 %v2070, %v2074
        %v2107 = vmul.f32 %v2071, %v2074
        %v2108 = vld [vmem:[%s6] sm:$0x1]
        %v2110 = vperm.slane %v2108, 0
        %v2112 = vadd.f32 %v2076, %v2110
        %v2113 = vadd.f32 %v2077, %v2110
        %v2114 = vadd.f32 %v2078, %v2110
        %v2115 = vadd.f32 %v2079, %v2110
        %v2116 = vadd.f32 %v2080, %v2110
        %v2117 = vadd.f32 %v2081, %v2110
        %v2118 = vadd.f32 %v2082, %v2110
        %v2119 = vadd.f32 %v2083, %v2110
        %v2120 = vadd.f32 %v2084, %v2110
        %v2121 = vadd.f32 %v2085, %v2110
        %v2122 = vadd.f32 %v2086, %v2110
        %v2123 = vadd.f32 %v2087, %v2110
        %v2124 = vadd.f32 %v2088, %v2110
        %v2125 = vadd.f32 %v2089, %v2110
        %v2126 = vadd.f32 %v2090, %v2110
        %v2127 = vadd.f32 %v2091, %v2110
        %v2128 = vadd.f32 %v2092, %v2110
        %v2129 = vadd.f32 %v2093, %v2110
        %v2130 = vadd.f32 %v2094, %v2110
        %v2131 = vadd.f32 %v2095, %v2110
        %v2132 = vadd.f32 %v2096, %v2110
        %v2133 = vadd.f32 %v2097, %v2110
        %v2134 = vadd.f32 %v2098, %v2110
        %v2135 = vadd.f32 %v2099, %v2110
        %v2136 = vadd.f32 %v2100, %v2110
        %v2137 = vadd.f32 %v2101, %v2110
        %v2138 = vadd.f32 %v2102, %v2110
        %v2139 = vadd.f32 %v2103, %v2110
        %v2140 = vadd.f32 %v2104, %v2110
        %v2141 = vadd.f32 %v2105, %v2110
        %v2142 = vadd.f32 %v2106, %v2110
        %v2143 = vadd.f32 %v2107, %v2110
        %v2144 = vmax.f32 %v2112, 0.0
        %v2145 = vmax.f32 %v2113, 0.0
        %v2146 = vmax.f32 %v2114, 0.0
        %v2147 = vmax.f32 %v2115, 0.0
        %v2148 = vmax.f32 %v2116, 0.0
        %v2149 = vmax.f32 %v2117, 0.0
        %v2150 = vmax.f32 %v2118, 0.0
        %v2151 = vmax.f32 %v2119, 0.0
        %v2152 = vmax.f32 %v2120, 0.0
        %v2153 = vmax.f32 %v2121, 0.0
        %v2154 = vmax.f32 %v2122, 0.0
        %v2155 = vmax.f32 %v2123, 0.0
        %v2156 = vmax.f32 %v2124, 0.0
        %v2157 = vmax.f32 %v2125, 0.0
        %v2158 = vmax.f32 %v2126, 0.0
        %v2159 = vmax.f32 %v2127, 0.0
        %v2160 = vmax.f32 %v2128, 0.0
        %v2161 = vmax.f32 %v2129, 0.0
        %v2162 = vmax.f32 %v2130, 0.0
        %v2163 = vmax.f32 %v2131, 0.0
        %v2164 = vmax.f32 %v2132, 0.0
        %v2165 = vmax.f32 %v2133, 0.0
        %v2166 = vmax.f32 %v2134, 0.0
        %v2167 = vmax.f32 %v2135, 0.0
        %v2168 = vmax.f32 %v2136, 0.0
        %v2169 = vmax.f32 %v2137, 0.0
        %v2170 = vmax.f32 %v2138, 0.0
        %v2171 = vmax.f32 %v2139, 0.0
        %v2172 = vmax.f32 %v2140, 0.0
        %v2173 = vmax.f32 %v2141, 0.0
        %v2174 = vmax.f32 %v2142, 0.0
        %v2175 = vmax.f32 %v2143, 0.0
        %v2176 = vld [vmem:[%s7] sm:$0xff]
        %v2177 = vld [vmem:[%s7 + $0x8] sm:$0xff]
        %v2179 = vsel %vm1191, %v2144, 0
        %v2182 = vsel %vm1191, %v2145, 0
        %v2185 = vsel %vm1191, %v2146, 0
        %v2188 = vsel %vm1191, %v2147, 0
        %v2191 = vsel %vm1191, %v2148, 0
        %v2194 = vsel %vm1191, %v2149, 0
        %v2197 = vsel %vm1191, %v2150, 0
        %v2200 = vsel %vm1191, %v2151, 0
        %v2203 = vsel %vm1191, %v2152, 0
        %v2206 = vsel %vm1191, %v2153, 0
        %v2209 = vsel %vm1191, %v2154, 0
        %v2212 = vsel %vm1191, %v2155, 0
        %v2215 = vsel %vm1191, %v2156, 0
        %v2218 = vsel %vm1191, %v2157, 0
        %v2221 = vsel %vm1191, %v2158, 0
        %v2224 = vsel %vm1191, %v2159, 0
        %v2227 = vsel %vm1191, %v2160, 0
        %v2230 = vsel %vm1191, %v2161, 0
        %v2233 = vsel %vm1191, %v2162, 0
        %v2236 = vsel %vm1191, %v2163, 0
        %v2239 = vsel %vm1191, %v2164, 0
        %v2242 = vsel %vm1191, %v2165, 0
        %v2245 = vsel %vm1191, %v2166, 0
        %v2248 = vsel %vm1191, %v2167, 0
        %v2251 = vsel %vm1191, %v2168, 0
        %v2254 = vsel %vm1191, %v2169, 0
        %v2257 = vsel %vm1191, %v2170, 0
        %v2260 = vsel %vm1191, %v2171, 0
        %v2263 = vsel %vm1191, %v2172, 0
        %v2266 = vsel %vm1191, %v2173, 0
        %v2269 = vsel %vm1191, %v2174, 0
        %v2272 = vsel %vm1191, %v2175, 0
        %2274 = vmatpush.msra.mxu0 0.0
        %2275 = vmatpush.msra.mxu0 0.0
        %2276 = vmatpush.msra.mxu0 0.0
        %2277 = vmatpush.msra.mxu0 0.0
        %2278 = vmatpush.msra.mxu0 0.0
        %2279 = vmatpush.msra.mxu0 0.0
        %2280 = vmatpush.msra.mxu0 0.0
        %2281 = vmatpush.msra.mxu0 0.0
        %2282 = vmatpush.msra.mxu0 0.0
        %2283 = vmatpush.msra.mxu0 0.0
        %2284 = vmatpush.msra.mxu0 0.0
        %2285 = vmatpush.msra.mxu0 0.0
        %2286 = vmatpush.msra.mxu0 0.0
        %2287 = vmatpush.msra.mxu0 0.0
        %2288 = vmatpush.msra.mxu0 %v2177
        %2289 = vmatpush.msra.mxu0 %v2176
        %2290 = vmatmul.f32.gmra.mxu0 %v2179
        %v2291 = vpop.f32.mrf.mxu0
        %v2292 = vadd.f32 0.0, %v2291
        %2293 = vmatmul.f32.gmra.mxu0 %v2182
        %v2294 = vpop.f32.mrf.mxu0
        %v2295 = vadd.f32 0.0, %v2294
        %2296 = vmatmul.f32.gmra.mxu0 %v2185
        %v2297 = vpop.f32.mrf.mxu0
        %v2298 = vadd.f32 0.0, %v2297
        %2299 = vmatmul.f32.gmra.mxu0 %v2188
        %v2300 = vpop.f32.mrf.mxu0
        %v2301 = vadd.f32 0.0, %v2300
        %2302 = vmatmul.f32.gmra.mxu0 %v2191
        %v2303 = vpop.f32.mrf.mxu0
        %v2304 = vadd.f32 0.0, %v2303
        %2305 = vmatmul.f32.gmra.mxu0 %v2194
        %v2306 = vpop.f32.mrf.mxu0
        %v2307 = vadd.f32 0.0, %v2306
        %2308 = vmatmul.f32.gmra.mxu0 %v2197
        %v2309 = vpop.f32.mrf.mxu0
        %v2310 = vadd.f32 0.0, %v2309
        %2311 = vmatmul.f32.gmra.mxu0 %v2200
        %v2312 = vpop.f32.mrf.mxu0
        %v2313 = vadd.f32 0.0, %v2312
        %2314 = vmatmul.f32.gmra.mxu0 %v2203
        %v2315 = vpop.f32.mrf.mxu0
        %v2316 = vadd.f32 0.0, %v2315
        %2317 = vmatmul.f32.gmra.mxu0 %v2206
        %v2318 = vpop.f32.mrf.mxu0
        %v2319 = vadd.f32 0.0, %v2318
        %2320 = vmatmul.f32.gmra.mxu0 %v2209
        %v2321 = vpop.f32.mrf.mxu0
        %v2322 = vadd.f32 0.0, %v2321
        %2323 = vmatmul.f32.gmra.mxu0 %v2212
        %v2324 = vpop.f32.mrf.mxu0
        %v2325 = vadd.f32 0.0, %v2324
        %2326 = vmatmul.f32.gmra.mxu0 %v2215
        %v2327 = vpop.f32.mrf.mxu0
        %v2328 = vadd.f32 0.0, %v2327
        %2329 = vmatmul.f32.gmra.mxu0 %v2218
        %v2330 = vpop.f32.mrf.mxu0
        %v2331 = vadd.f32 0.0, %v2330
        %2332 = vmatmul.f32.gmra.mxu0 %v2221
        %v2333 = vpop.f32.mrf.mxu0
        %v2334 = vadd.f32 0.0, %v2333
        %2335 = vmatmul.f32.gmra.mxu0 %v2224
        %v2336 = vpop.f32.mrf.mxu0
        %v2337 = vadd.f32 0.0, %v2336
        %2338 = vmatmul.f32.gmra.mxu0 %v2227
        %v2339 = vpop.f32.mrf.mxu0
        %v2340 = vadd.f32 0.0, %v2339
        %2341 = vmatmul.f32.gmra.mxu0 %v2230
        %v2342 = vpop.f32.mrf.mxu0
        %v2343 = vadd.f32 0.0, %v2342
        %2344 = vmatmul.f32.gmra.mxu0 %v2233
        %v2345 = vpop.f32.mrf.mxu0
        %v2346 = vadd.f32 0.0, %v2345
        %2347 = vmatmul.f32.gmra.mxu0 %v2236
        %v2348 = vpop.f32.mrf.mxu0
        %v2349 = vadd.f32 0.0, %v2348
        %2350 = vmatmul.f32.gmra.mxu0 %v2239
        %v2351 = vpop.f32.mrf.mxu0
        %v2352 = vadd.f32 0.0, %v2351
        %2353 = vmatmul.f32.gmra.mxu0 %v2242
        %v2354 = vpop.f32.mrf.mxu0
        %v2355 = vadd.f32 0.0, %v2354
        %2356 = vmatmul.f32.gmra.mxu0 %v2245
        %v2357 = vpop.f32.mrf.mxu0
        %v2358 = vadd.f32 0.0, %v2357
        %2359 = vmatmul.f32.gmra.mxu0 %v2248
        %v2360 = vpop.f32.mrf.mxu0
        %v2361 = vadd.f32 0.0, %v2360
        %2362 = vmatmul.f32.gmra.mxu0 %v2251
        %v2363 = vpop.f32.mrf.mxu0
        %v2364 = vadd.f32 0.0, %v2363
        %2365 = vmatmul.f32.gmra.mxu0 %v2254
        %v2366 = vpop.f32.mrf.mxu0
        %v2367 = vadd.f32 0.0, %v2366
        %2368 = vmatmul.f32.gmra.mxu0 %v2257
        %v2369 = vpop.f32.mrf.mxu0
        %v2370 = vadd.f32 0.0, %v2369
        %2371 = vmatmul.f32.gmra.mxu0 %v2260
        %v2372 = vpop.f32.mrf.mxu0
        %v2373 = vadd.f32 0.0, %v2372
        %2374 = vmatmul.f32.gmra.mxu0 %v2263
        %v2375 = vpop.f32.mrf.mxu0
        %v2376 = vadd.f32 0.0, %v2375
        %2377 = vmatmul.f32.gmra.mxu0 %v2266
        %v2378 = vpop.f32.mrf.mxu0
        %v2379 = vadd.f32 0.0, %v2378
        %2380 = vmatmul.f32.gmra.mxu0 %v2269
        %v2381 = vpop.f32.mrf.mxu0
        %v2382 = vadd.f32 0.0, %v2381
        %2383 = vmatmul.f32.gmra.mxu0 %v2272
        %v2384 = vpop.f32.mrf.mxu0
        %v2385 = vadd.f32 0.0, %v2384
        %2386 = vdwg.mxu0
        %v2387 = vld [vmem:[%s8] sm:$0x1]
        %v2389 = vperm.slane %v2387, 0
        %v2391 = vmul.f32 %v2292, %v2389
        %v2392 = vmul.f32 %v2295, %v2389
        %v2393 = vmul.f32 %v2298, %v2389
        %v2394 = vmul.f32 %v2301, %v2389
        %v2395 = vmul.f32 %v2304, %v2389
        %v2396 = vmul.f32 %v2307, %v2389
        %v2397 = vmul.f32 %v2310, %v2389
        %v2398 = vmul.f32 %v2313, %v2389
        %v2399 = vmul.f32 %v2316, %v2389
        %v2400 = vmul.f32 %v2319, %v2389
        %v2401 = vmul.f32 %v2322, %v2389
        %v2402 = vmul.f32 %v2325, %v2389
        %v2403 = vmul.f32 %v2328, %v2389
        %v2404 = vmul.f32 %v2331, %v2389
        %v2405 = vmul.f32 %v2334, %v2389
        %v2406 = vmul.f32 %v2337, %v2389
        %v2407 = vmul.f32 %v2340, %v2389
        %v2408 = vmul.f32 %v2343, %v2389
        %v2409 = vmul.f32 %v2346, %v2389
        %v2410 = vmul.f32 %v2349, %v2389
        %v2411 = vmul.f32 %v2352, %v2389
        %v2412 = vmul.f32 %v2355, %v2389
        %v2413 = vmul.f32 %v2358, %v2389
        %v2414 = vmul.f32 %v2361, %v2389
        %v2415 = vmul.f32 %v2364, %v2389
        %v2416 = vmul.f32 %v2367, %v2389
        %v2417 = vmul.f32 %v2370, %v2389
        %v2418 = vmul.f32 %v2373, %v2389
        %v2419 = vmul.f32 %v2376, %v2389
        %v2420 = vmul.f32 %v2379, %v2389
        %v2421 = vmul.f32 %v2382, %v2389
        %v2422 = vmul.f32 %v2385, %v2389
        %v2423 = vld [vmem:[%s9] sm:$0x1]
        %v2425 = vperm.slane %v2423, 0
        %v2427 = vadd.f32 %v2391, %v2425
        %v2428 = vadd.f32 %v2392, %v2425
        %v2429 = vadd.f32 %v2393, %v2425
        %v2430 = vadd.f32 %v2394, %v2425
        %v2431 = vadd.f32 %v2395, %v2425
        %v2432 = vadd.f32 %v2396, %v2425
        %v2433 = vadd.f32 %v2397, %v2425
        %v2434 = vadd.f32 %v2398, %v2425
        %v2435 = vadd.f32 %v2399, %v2425
        %v2436 = vadd.f32 %v2400, %v2425
        %v2437 = vadd.f32 %v2401, %v2425
        %v2438 = vadd.f32 %v2402, %v2425
        %v2439 = vadd.f32 %v2403, %v2425
        %v2440 = vadd.f32 %v2404, %v2425
        %v2441 = vadd.f32 %v2405, %v2425
        %v2442 = vadd.f32 %v2406, %v2425
        %v2443 = vadd.f32 %v2407, %v2425
        %v2444 = vadd.f32 %v2408, %v2425
        %v2445 = vadd.f32 %v2409, %v2425
        %v2446 = vadd.f32 %v2410, %v2425
        %v2447 = vadd.f32 %v2411, %v2425
        %v2448 = vadd.f32 %v2412, %v2425
        %v2449 = vadd.f32 %v2413, %v2425
        %v2450 = vadd.f32 %v2414, %v2425
        %v2451 = vadd.f32 %v2415, %v2425
        %v2452 = vadd.f32 %v2416, %v2425
        %v2453 = vadd.f32 %v2417, %v2425
        %v2454 = vadd.f32 %v2418, %v2425
        %v2455 = vadd.f32 %v2419, %v2425
        %v2456 = vadd.f32 %v2420, %v2425
        %v2457 = vadd.f32 %v2421, %v2425
        %v2458 = vadd.f32 %v2422, %v2425
        %v2459 = vld [vmem:[%s342] sm:$0xff]
        %v2460 = vld [vmem:[%s342 + $0x8] sm:$0xff]
        %v2461 = vld [vmem:[%s342 + $0x10] sm:$0xff]
        %v2462 = vld [vmem:[%s342 + $0x18] sm:$0xff]
        %v2463 = vld [vmem:[%s342 + $0x20] sm:$0xff]
        %v2464 = vld [vmem:[%s342 + $0x28] sm:$0xff]
        %v2465 = vld [vmem:[%s342 + $0x30] sm:$0xff]
        %v2466 = vld [vmem:[%s342 + $0x38] sm:$0xff]
        %v2467 = vld [vmem:[%s342 + $0x40] sm:$0xff]
        %v2468 = vld [vmem:[%s342 + $0x48] sm:$0xff]
        %v2469 = vld [vmem:[%s342 + $0x50] sm:$0xff]
        %v2470 = vld [vmem:[%s342 + $0x58] sm:$0xff]
        %v2471 = vld [vmem:[%s342 + $0x60] sm:$0xff]
        %v2472 = vld [vmem:[%s342 + $0x68] sm:$0xff]
        %v2473 = vld [vmem:[%s342 + $0x70] sm:$0xff]
        %v2474 = vld [vmem:[%s342 + $0x78] sm:$0xff]
        %v2475 = vld [vmem:[%s342 + $0x80] sm:$0xff]
        %v2476 = vld [vmem:[%s342 + $0x88] sm:$0xff]
        %v2477 = vld [vmem:[%s342 + $0x90] sm:$0xff]
        %v2478 = vld [vmem:[%s342 + $0x98] sm:$0xff]
        %v2479 = vld [vmem:[%s342 + $0xa0] sm:$0xff]
        %v2480 = vld [vmem:[%s342 + $0xa8] sm:$0xff]
        %v2481 = vld [vmem:[%s342 + $0xb0] sm:$0xff]
        %v2482 = vld [vmem:[%s342 + $0xb8] sm:$0xff]
        %v2483 = vld [vmem:[%s342 + $0xc0] sm:$0xff]
        %v2484 = vld [vmem:[%s342 + $0xc8] sm:$0xff]
        %v2485 = vld [vmem:[%s342 + $0xd0] sm:$0xff]
        %v2486 = vld [vmem:[%s342 + $0xd8] sm:$0xff]
        %v2487 = vld [vmem:[%s342 + $0xe0] sm:$0xff]
        %v2488 = vld [vmem:[%s342 + $0xe8] sm:$0xff]
        %v2489 = vld [vmem:[%s342 + $0xf0] sm:$0xff]
        %v2490 = vld [vmem:[%s342 + $0xf8] sm:$0xff]
        %v2491 = vadd.f32 %v2427, %v2459
        %v2492 = vadd.f32 %v2428, %v2460
        %v2493 = vadd.f32 %v2429, %v2461
        %v2494 = vadd.f32 %v2430, %v2462
        %v2495 = vadd.f32 %v2431, %v2463
        %v2496 = vadd.f32 %v2432, %v2464
        %v2497 = vadd.f32 %v2433, %v2465
        %v2498 = vadd.f32 %v2434, %v2466
        %v2499 = vadd.f32 %v2435, %v2467
        %v2500 = vadd.f32 %v2436, %v2468
        %v2501 = vadd.f32 %v2437, %v2469
        %v2502 = vadd.f32 %v2438, %v2470
        %v2503 = vadd.f32 %v2439, %v2471
        %v2504 = vadd.f32 %v2440, %v2472
        %v2505 = vadd.f32 %v2441, %v2473
        %v2506 = vadd.f32 %v2442, %v2474
        %v2507 = vadd.f32 %v2443, %v2475
        %v2508 = vadd.f32 %v2444, %v2476
        %v2509 = vadd.f32 %v2445, %v2477
        %v2510 = vadd.f32 %v2446, %v2478
        %v2511 = vadd.f32 %v2447, %v2479
        %v2512 = vadd.f32 %v2448, %v2480
        %v2513 = vadd.f32 %v2449, %v2481
        %v2514 = vadd.f32 %v2450, %v2482
        %v2515 = vadd.f32 %v2451, %v2483
        %v2516 = vadd.f32 %v2452, %v2484
        %v2517 = vadd.f32 %v2453, %v2485
        %v2518 = vadd.f32 %v2454, %v2486
        %v2519 = vadd.f32 %v2455, %v2487
        %v2520 = vadd.f32 %v2456, %v2488
        %v2521 = vadd.f32 %v2457, %v2489
        %v2522 = vadd.f32 %v2458, %v2490
        %v2523 = vmax.f32 %v2491, 0.0
        %v2524 = vmax.f32 %v2492, 0.0
        %v2525 = vmax.f32 %v2493, 0.0
        %v2526 = vmax.f32 %v2494, 0.0
        %v2527 = vmax.f32 %v2495, 0.0
        %v2528 = vmax.f32 %v2496, 0.0
        %v2529 = vmax.f32 %v2497, 0.0
        %v2530 = vmax.f32 %v2498, 0.0
        %v2531 = vmax.f32 %v2499, 0.0
        %v2532 = vmax.f32 %v2500, 0.0
        %v2533 = vmax.f32 %v2501, 0.0
        %v2534 = vmax.f32 %v2502, 0.0
        %v2535 = vmax.f32 %v2503, 0.0
        %v2536 = vmax.f32 %v2504, 0.0
        %v2537 = vmax.f32 %v2505, 0.0
        %v2538 = vmax.f32 %v2506, 0.0
        %v2539 = vmax.f32 %v2507, 0.0
        %v2540 = vmax.f32 %v2508, 0.0
        %v2541 = vmax.f32 %v2509, 0.0
        %v2542 = vmax.f32 %v2510, 0.0
        %v2543 = vmax.f32 %v2511, 0.0
        %v2544 = vmax.f32 %v2512, 0.0
        %v2545 = vmax.f32 %v2513, 0.0
        %v2546 = vmax.f32 %v2514, 0.0
        %v2547 = vmax.f32 %v2515, 0.0
        %v2548 = vmax.f32 %v2516, 0.0
        %v2549 = vmax.f32 %v2517, 0.0
        %v2550 = vmax.f32 %v2518, 0.0
        %v2551 = vmax.f32 %v2519, 0.0
        %v2552 = vmax.f32 %v2520, 0.0
        %v2553 = vmax.f32 %v2521, 0.0
        %v2554 = vmax.f32 %v2522, 0.0
        %2555 = vst.msk [vmem:[%s379] sm:$0xff] %vm420, %v2523
        %2556 = vst.msk [vmem:[%s379 + $0x8] sm:$0xff] %vm420, %v2524
        %2557 = vst.msk [vmem:[%s379 + $0x10] sm:$0xff] %vm420, %v2525
        %2558 = vst.msk [vmem:[%s379 + $0x18] sm:$0xff] %vm420, %v2526
        %2559 = vst.msk [vmem:[%s379 + $0x20] sm:$0xff] %vm420, %v2527
        %2560 = vst.msk [vmem:[%s379 + $0x28] sm:$0xff] %vm420, %v2528
        %2561 = vst.msk [vmem:[%s379 + $0x30] sm:$0xff] %vm420, %v2529
        %2562 = vst.msk [vmem:[%s379 + $0x38] sm:$0xff] %vm420, %v2530
        %2563 = vst.msk [vmem:[%s379 + $0x40] sm:$0xff] %vm420, %v2531
        %2564 = vst.msk [vmem:[%s379 + $0x48] sm:$0xff] %vm420, %v2532
        %2565 = vst.msk [vmem:[%s379 + $0x50] sm:$0xff] %vm420, %v2533
        %2566 = vst.msk [vmem:[%s379 + $0x58] sm:$0xff] %vm420, %v2534
        %2567 = vst.msk [vmem:[%s379 + $0x60] sm:$0xff] %vm420, %v2535
        %2568 = vst.msk [vmem:[%s379 + $0x68] sm:$0xff] %vm420, %v2536
        %2569 = vst.msk [vmem:[%s379 + $0x70] sm:$0xff] %vm420, %v2537
        %2570 = vst.msk [vmem:[%s379 + $0x78] sm:$0xff] %vm420, %v2538
        %2571 = vst.msk [vmem:[%s379 + $0x80] sm:$0xff] %vm420, %v2539
        %2572 = vst.msk [vmem:[%s379 + $0x88] sm:$0xff] %vm420, %v2540
        %2573 = vst.msk [vmem:[%s379 + $0x90] sm:$0xff] %vm420, %v2541
        %2574 = vst.msk [vmem:[%s379 + $0x98] sm:$0xff] %vm420, %v2542
        %2575 = vst.msk [vmem:[%s379 + $0xa0] sm:$0xff] %vm420, %v2543
        %2576 = vst.msk [vmem:[%s379 + $0xa8] sm:$0xff] %vm420, %v2544
        %2577 = vst.msk [vmem:[%s379 + $0xb0] sm:$0xff] %vm420, %v2545
        %2578 = vst.msk [vmem:[%s379 + $0xb8] sm:$0xff] %vm420, %v2546
        %2579 = vst.msk [vmem:[%s379 + $0xc0] sm:$0xff] %vm420, %v2547
        %2580 = vst.msk [vmem:[%s379 + $0xc8] sm:$0xff] %vm420, %v2548
        %2581 = vst.msk [vmem:[%s379 + $0xd0] sm:$0xff] %vm420, %v2549
        %2582 = vst.msk [vmem:[%s379 + $0xd8] sm:$0xff] %vm420, %v2550
        %2583 = vst.msk [vmem:[%s379 + $0xe0] sm:$0xff] %vm420, %v2551
        %2584 = vst.msk [vmem:[%s379 + $0xe8] sm:$0xff] %vm420, %v2552
        %2585 = vst.msk [vmem:[%s379 + $0xf0] sm:$0xff] %vm420, %v2553
        %2586 = vst.msk [vmem:[%s379 + $0xf8] sm:$0xff] %vm420, %v2554
        %s2587 = sand.u32 %s250, 1
        %s2588 = scalar_lea.sflag [#allocation5], %s2587
        %s2589 = sand.u32 %s250, 1
        %s2590 = smul.addr %s2589, 256
        %s2591 = scalar_lea.vmem [#allocation6], %s2590
        // Predicated region
        $region65: #{tpu_custom_call.1} parent=59 // pred_check
          %p2592 = pneg %p260
        $region66: #{tpu_custom_call.1} parent=59 // pred_check_branch
          %2594 = sbr.rel (%p2592) target = $region68
        $region67: #{tpu_custom_call.1} parent=59 // pred_region
          %2596 = vsyncadd %s2588, 0
          %s2597 = smul.addr %s27, 32
          %s2598 = smul.addr %s2597, 8
          %s2599 = scalar_lea.hbm %s10, %s2598
          %s2600 = sshll.u32 %s2591, 4
          %s2601 = int_to_ptr.vmem [resolvable:$true] %s2600
          %s2602 = sshll.u32 %s2599, 4
          %s2603 = int_to_ptr.hbm [resolvable:$true] %s2602
          %2608 = dma.vmem_to_hbm [thread:$0]  %s2601, 4096, %s2603, %s2588, 128, 128, 8
        $region68: #{tpu_custom_call.1} parent=59 // pred_fallthru
          _
      $region60: #{tpu_custom_call.1} parent=5 // pred_fallthru
        _
      %p2609 = scmp.le.s32.totalorder 2, %s22
      // Predicated region
      $region69: #{tpu_custom_call.1} parent=5 // pred_check
        %p2610 = pneg %p2609
      $region70: #{tpu_custom_call.1} parent=5 // pred_check_branch
        %2612 = sbr.rel (%p2610) target = $region72
      $region71: #{tpu_custom_call.1} parent=5 // pred_region
        %s2613 = ssub.s32 %s22, 2
        // Predicated region
        $region73: #{tpu_custom_call.1} parent=71 // pred_check
          %p2614 = pneg %p266
        $region74: #{tpu_custom_call.1} parent=71 // pred_check_branch
          %2616 = sbr.rel (%p2614) target = $region76
        $region75: #{tpu_custom_call.1} parent=71 // pred_region
          %s2617 = sand.u32 %s251, 1
          %s2618 = scalar_lea.sflag [#allocation5], %s2617
          %s2619 = sand.u32 %s251, 1
          %s2620 = smul.addr %s2619, 256
          %s2621 = scalar_lea.vmem [#allocation6], %s2620
          %2623 = dma.done %s2618, 4096
        $region76: #{tpu_custom_call.1} parent=71 // pred_fallthru
          _
      $region72: #{tpu_custom_call.1} parent=5 // pred_fallthru
        _
    $region6: #{tpu_custom_call.1} parent=1 // loop_footer
      %s26 = sadd.s32 1, %s22
    $region7: #{tpu_custom_call.1} parent=1 // loop_footer_branch
      %21 = sbr.rel target = $region3
    $region8: #{tpu_custom_call.1} parent=1 // loop_exit
      _
    %2624 = vsyncpa [#allocation4], 1
    %s2625 = scalar_lea.sflag [#allocation4], 1
    %2626 = vsyncpa %s2625, 1
    %2627 = vsyncpa [#allocation5], 1
    %s2628 = scalar_lea.sflag [#allocation5], 1
    %2629 = vsyncpa %s2628, 1

</llo_original>
